<compile_context>
chip_gen: v7x
topology: tpu7x:2x2x1
jax: 0.10.0
libtpu: 0.0.40
codegen_flags: <defaults>
</compile_context>

<pallas_src>
import functools

import jax
import jax.numpy as jnp
from jax.experimental import pallas as pl
from jax.experimental.pallas import tpu as pltpu


_CHUNK = 512          # points per in-kernel chunk (lane width of the inner loop)
_TARGET_TILE = 4096   # target points per grid step (DMA block); ~4-5 MiB VMEM,
                      # comfortably under every chip's default scoped VMEM limit.


def _num_tensorcores() -> int:
    """Best-effort TensorCore count (v5e/v6e: 1, v7x: 2); falls back to 1."""
    try:
        info = pltpu.get_tpu_info()
        for name in ("num_cores", "core_count", "num_tensorcores",
                     "tensorcore_count", "num_cores_per_chip"):
            v = getattr(info, name, None)
            if isinstance(v, int) and 1 <= v <= 16:
                return v
    except Exception:
        pass
    try:
        dev = jax.devices()[0]
        for name in ("num_cores", "core_count"):
            v = getattr(dev, name, None)
            if isinstance(v, int) and 1 <= v <= 16:
                return v
    except Exception:
        pass
    return 1


def _mlp_kernel(x_ref, w02x_ref, w1_ref, w2h_ref, w3_ref, b_ref, o_ref, *,
                hidden_dim, chunk, chunks_per_tile):
    H = hidden_dim
    O = w3_ref.shape[0]

    # Tiny weights / biases: load once per grid step (VMEM-resident anyway).
    w02x = w02x_ref[...]                        # (2H, D) f32
    w1 = w1_ref[...]                            # (H, H)  bf16
    w2h = w2h_ref[...]                          # (H, H)  bf16
    w3 = w3_ref[...]                            # (O, H)  f32
    b = b_ref[...]                              # (H, 4)  f32  packed biases
    b0, b1, b2 = b[:, 0:1], b[:, 1:2], b[:, 2:3]
    b3 = b[:O, 3:4]

    def chunk_body(c, carry):
        start = pl.multiple_of(c * chunk, chunk)
        xc = x_ref[pl.ds(start, chunk), :].astype(jnp.float32)      # (CH, D)

        # Fused x-side matmul: [W0; W2x] @ xc^T -> (2H, CH), contracting the
        # D axis of both operands (q @ k^T pattern — no wrapper/kernel
        # transpose of x needed).  Rows 0:H are the layer-0 pre-activation,
        # rows H:2H are the layer-2 skip term.
        xz = jax.lax.dot_general(w02x, xc, (((1,), (1,)), ((), ())),
                                 preferred_element_type=jnp.float32)
        z0, zskip = xz[:H, :], xz[H:, :]                            # (H, CH)

        # Layer 0 + ReLU (f32 elementwise, lane-dense).
        h = jnp.maximum(z0 + b0, 0.0)

        # Layer 1 + ReLU: bf16 MXU inputs, f32 accumulate.
        h = jnp.dot(w1, h.astype(jnp.bfloat16),
                    preferred_element_type=jnp.float32) + b1
        h = jnp.maximum(h, 0.0)

        # Layer 2 (skip as split matmul: W2h @ h + W2x @ x) + ReLU.
        h = jnp.dot(w2h, h.astype(jnp.bfloat16),
                    preferred_element_type=jnp.float32) + zskip + b2
        h = jnp.maximum(h, 0.0)

        # Layer 3 (no activation), kept f32.  Lane-dense (O, CH) store.
        out = jnp.dot(w3, h, preferred_element_type=jnp.float32) + b3
        o_ref[:, pl.ds(start, chunk)] = out.astype(o_ref.dtype)
        return carry

    jax.lax.fori_loop(0, chunks_per_tile, chunk_body, 0, unroll=True)


def _pick_chunks_per_tile(n_chunks, cores, max_chunks_per_tile):
    """Largest divisor of n_chunks <= max_chunks_per_tile that still yields
    enough grid steps for the available TensorCores (>= 2*cores when
    possible; a single big step on 1-TC chips)."""
    min_steps = 1 if cores <= 1 else min(2 * cores, n_chunks)
    best = 1
    for d in range(1, min(n_chunks, max_chunks_per_tile) + 1):
        if n_chunks % d == 0 and n_chunks // d >= min_steps:
            best = d
    return best


def mlp_forward(x, params, *, target_tile=_TARGET_TILE, transposed_output=False):
    """x: [N, input_dim] float32.

    Returns [N, output_dim] (module semantics).  With transposed_output=True
    the lane-dense (output_dim, N) kernel result is returned directly, saving
    one HBM pass of the output.
    """
    N, D = x.shape
    H = params["biases"].shape[0]
    O = params["w3"].shape[0]

    # Pad the batch so every grid step / chunk is full (any N is accepted).
    n_pad = (-N) % _CHUNK
    if n_pad:
        x = jnp.pad(x, ((0, n_pad), (0, 0)))
    Np = N + n_pad
    n_chunks = Np // _CHUNK

    cores = _num_tensorcores()
    chunks_per_tile = _pick_chunks_per_tile(
        n_chunks, cores, max(1, target_tile // _CHUNK))
    tile_n = chunks_per_tile * _CHUNK
    grid = (n_chunks // chunks_per_tile,)

    full = lambda shape: pl.BlockSpec(shape, lambda i: (0, 0))

    grid_spec = pltpu.PrefetchScalarGridSpec(
        num_scalar_prefetch=0,
        grid=grid,
        in_specs=[
            pl.BlockSpec((tile_n, D), lambda i: (i, 0)),   # x tile, natural layout
            full((2 * H, D)),                              # [W0; W2x]  f32
            full((H, H)),                                  # W1         bf16
            full((H, H)),                                  # W2h        bf16
            full((O, H)),                                  # W3         f32
            full((H, 4)),                                  # packed biases f32
        ],
        out_specs=pl.BlockSpec((O, tile_n), lambda i: (0, i)),
    )

    out_t = pl.pallas_call(
        functools.partial(_mlp_kernel, hidden_dim=H, chunk=_CHUNK,
                          chunks_per_tile=chunks_per_tile),
        out_shape=jax.ShapeDtypeStruct((O, Np), x.dtype),
        grid_spec=grid_spec,
        # Per-step VMEM (double-buffered, lane-padded x/out blocks) is ~4-5 MiB
        # at the default tile; no vmem_limit_bytes override needed on any chip.
        compiler_params=pltpu.CompilerParams(dimension_semantics=("parallel",)),
    )(x, params["w02x"], params["w1"], params["w2h"], params["w3"],
      params["biases"])

    if n_pad:
        out_t = out_t[:, :N]
    if transposed_output:
        return out_t                                       # (O, N), lane-dense
    # [N, O] is the module's interface; this transpose is one extra HBM pass of
    # the narrow (O=2) output — accepted per review.  Use transposed_output or
    # fuse into the downstream consumer to avoid it.
    return out_t.T


def init_params(key, input_dim, output_dim, hidden_dim):
    """nn.Linear-style init (U(+-1/sqrt(fan_in))), laid out for the kernel:
      - w02x:   [W0; W2x] stacked (2H, D) f32   (x-side, K=input_dim matmuls)
      - w1,w2h: (H, H) bf16                     (hidden matmuls, f32 accumulate)
      - w3:     (O, H) f32                      (final layer kept f32)
      - biases: (H, 4) f32, columns [b0, b1, b2, b3(zero-padded)]
    """
    assert hidden_dim % 8 == 0, "hidden_dim must be sublane-aligned (multiple of 8)"
    assert output_dim <= hidden_dim

    def linear(k, fan_in, fan_out):
        kw, kb = jax.random.split(k)
        bound = 1.0 / jnp.sqrt(fan_in)
        w = jax.random.uniform(kw, (fan_out, fan_in), jnp.float32, -bound, bound)
        b = jax.random.uniform(kb, (fan_out,), jnp.float32, -bound, bound)
        return w, b

    k0, k1, k2, k3 = jax.random.split(key, 4)
    w0, b0 = linear(k0, input_dim, hidden_dim)
    w1, b1 = linear(k1, hidden_dim, hidden_dim)
    # Layer 2 consumes cat([h, x]) of width hidden_dim + input_dim.
    w2, b2 = linear(k2, hidden_dim + input_dim, hidden_dim)
    w2h, w2x = w2[:, :hidden_dim], w2[:, hidden_dim:]
    w3, b3 = linear(k3, hidden_dim, output_dim)

    biases = jnp.zeros((hidden_dim, 4), jnp.float32)
    biases = biases.at[:, 0].set(b0).at[:, 1].set(b1).at[:, 2].set(b2)
    biases = biases.at[:output_dim, 3].set(b3)

    return dict(
        w02x=jnp.concatenate([w0, w2x], axis=0),   # (2H, D) f32
        w1=w1.astype(jnp.bfloat16),                # (H, H)  bf16
        w2h=w2h.astype(jnp.bfloat16),              # (H, H)  bf16
        w3=w3,                                     # (O, H)  f32
        biases=biases,                             # (H, 4)  f32
    )


def mlp_reference(x, p):
    """Pure-JAX forward mirroring the kernel's numerics (bf16 hidden matmuls
    with f32 accumulation; f32 HIGHEST-precision first/last matmuls)."""
    H = p["biases"].shape[0]
    O = p["w3"].shape[0]
    hp = jax.lax.Precision.HIGHEST
    w0, w2x = p["w02x"][:H], p["w02x"][H:]
    b0, b1, b2 = p["biases"][:, 0], p["biases"][:, 1], p["biases"][:, 2]
    b3 = p["biases"][:O, 3]
    h = jnp.maximum(jnp.dot(x, w0.T, precision=hp) + b0, 0.0)
    h = jnp.maximum(jnp.dot(h.astype(jnp.bfloat16), p["w1"].T,
                            preferred_element_type=jnp.float32) + b1, 0.0)
    h = jnp.maximum(jnp.dot(h.astype(jnp.bfloat16), p["w2h"].T,
                            preferred_element_type=jnp.float32)
                    + jnp.dot(x, w2x.T, precision=hp) + b2, 0.0)
    return jnp.dot(h, p["w3"].T, precision=hp) + b3


if __name__ == "__main__":
    input_dim, output_dim, hidden_dim = 3, 2, 32   # small INR-style MLP
    N = 1000   # deliberately NOT a multiple of the chunk: exercises padding

    key = jax.random.PRNGKey(0)
    kp, kx = jax.random.split(key)
    params = init_params(kp, input_dim, output_dim, hidden_dim)
    x = jax.random.normal(kx, (N, input_dim), jnp.float32)

    out = jax.block_until_ready(mlp_forward(x, params))
    ref = mlp_reference(x, params)

    assert out.shape == (N, output_dim)
    # Compared against a numerics-mirrored reference; tolerance absorbs bf16
    # rounding-boundary and MXU accumulation-order differences.
    assert jnp.allclose(out, ref, atol=5e-3, rtol=5e-3), (
        "max abs err = %f" % float(jnp.max(jnp.abs(out - ref))))

    print("KERNEL_OK")
</pallas_src>

<mosaic_0001>
module attributes {stable_mosaic.version = 11 : i64} {
  func.func @_mlp_kernel(%arg0: i32, %arg1: memref<1024x3xf32, #tpu.memory_space<vmem>>, %arg2: memref<64x3xf32, #tpu.memory_space<vmem>>, %arg3: memref<32x32xbf16, #tpu.memory_space<vmem>>, %arg4: memref<32x32xbf16, #tpu.memory_space<vmem>>, %arg5: memref<2x32xf32, #tpu.memory_space<vmem>>, %arg6: memref<32x4xf32, #tpu.memory_space<vmem>>, %arg7: memref<2x1024xf32, #tpu.memory_space<vmem>>) attributes {dimension_semantics = [#tpu.dimension_semantics<parallel>], iteration_bounds = array<i64: 1>, scalar_prefetch = 0 : i64, scratch_operands = 0 : i64, tpu.core_type = #tpu.core_type<tc>, window_params = [{transform_indices = @transform_0, window_bounds = array<i64: 1024, 3>}, {pipeline_mode = #tpu.pipeline_mode<synchronous>, transform_indices = @transform_1, window_bounds = array<i64: 64, 3>}, {pipeline_mode = #tpu.pipeline_mode<synchronous>, transform_indices = @transform_2, window_bounds = array<i64: 32, 32>}, {pipeline_mode = #tpu.pipeline_mode<synchronous>, transform_indices = @transform_3, window_bounds = array<i64: 32, 32>}, {pipeline_mode = #tpu.pipeline_mode<synchronous>, transform_indices = @transform_4, window_bounds = array<i64: 2, 32>}, {pipeline_mode = #tpu.pipeline_mode<synchronous>, transform_indices = @transform_5, window_bounds = array<i64: 32, 4>}, {transform_indices = @transform_6, window_bounds = array<i64: 2, 1024>}]} {
    %c0 = arith.constant 0 : index
    %c0_0 = arith.constant 0 : index
    %0 = vector.load %arg2[%c0, %c0_0] : memref<64x3xf32, #tpu.memory_space<vmem>>, vector<64x3xf32>
    %c0_1 = arith.constant 0 : index
    %c0_2 = arith.constant 0 : index
    %1 = vector.load %arg3[%c0_1, %c0_2] : memref<32x32xbf16, #tpu.memory_space<vmem>>, vector<32x32xbf16>
    %c0_3 = arith.constant 0 : index
    %c0_4 = arith.constant 0 : index
    %2 = vector.load %arg4[%c0_3, %c0_4] : memref<32x32xbf16, #tpu.memory_space<vmem>>, vector<32x32xbf16>
    %c0_5 = arith.constant 0 : index
    %c0_6 = arith.constant 0 : index
    %3 = vector.load %arg5[%c0_5, %c0_6] : memref<2x32xf32, #tpu.memory_space<vmem>>, vector<2x32xf32>
    %c0_7 = arith.constant 0 : index
    %c0_8 = arith.constant 0 : index
    %4 = vector.load %arg6[%c0_7, %c0_8] : memref<32x4xf32, #tpu.memory_space<vmem>>, vector<32x4xf32>
    %5 = vector.extract_strided_slice %4 {offsets = [0, 0], sizes = [32, 1], strides = [1, 1]} : vector<32x4xf32> to vector<32x1xf32>
    %6 = vector.extract_strided_slice %4 {offsets = [0, 1], sizes = [32, 1], strides = [1, 1]} : vector<32x4xf32> to vector<32x1xf32>
    %7 = vector.extract_strided_slice %4 {offsets = [0, 2], sizes = [32, 1], strides = [1, 1]} : vector<32x4xf32> to vector<32x1xf32>
    %8 = vector.extract_strided_slice %4 {offsets = [0, 3], sizes = [2, 1], strides = [1, 1]} : vector<32x4xf32> to vector<2x1xf32>
    %c0_i32 = arith.constant 0 : i32
    %c512_i32 = arith.constant 512 : i32
    %9 = arith.muli %c0_i32, %c512_i32 : i32
    %10 = tpu.assume_multiple %9, 512 : i32
    %11 = arith.index_cast %10 : i32 to index
    %c0_9 = arith.constant 0 : index
    %12 = vector.load %arg1[%11, %c0_9] : memref<1024x3xf32, #tpu.memory_space<vmem>>, vector<512x3xf32>
    %cst = arith.constant dense<0.000000e+00> : vector<64x512xf32>
    %13 = tpu.matmul %0, %12, %cst {dimension_numbers = #tpu.dot_dimension_numbers<[1], [1], [0], [0], [0, 0, 1, 0], [], []>} : vector<64x3xf32>, vector<512x3xf32>, vector<64x512xf32> -> vector<64x512xf32>
    %14 = vector.extract_strided_slice %13 {offsets = [0, 0], sizes = [32, 512], strides = [1, 1]} : vector<64x512xf32> to vector<32x512xf32>
    %15 = vector.extract_strided_slice %13 {offsets = [32, 0], sizes = [32, 512], strides = [1, 1]} : vector<64x512xf32> to vector<32x512xf32>
    %16 = vector.broadcast %5 : vector<32x1xf32> to vector<32x512xf32>
    %17 = arith.addf %14, %16 : vector<32x512xf32>
    %cst_10 = arith.constant 0.000000e+00 : f32
    %18 = vector.broadcast %cst_10 : f32 to vector<32x512xf32>
    %19 = arith.maximumf %17, %18 : vector<32x512xf32>
    %20 = arith.truncf %19 : vector<32x512xf32> to vector<32x512xbf16>
    %cst_11 = arith.constant dense<0.000000e+00> : vector<32x512xf32>
    %21 = tpu.matmul %1, %20, %cst_11 {dimension_numbers = #tpu.dot_dimension_numbers<[1], [0], [0], [1], [0, 0, 1, 1], [], []>} : vector<32x32xbf16>, vector<32x512xbf16>, vector<32x512xf32> -> vector<32x512xf32>
    %22 = vector.broadcast %6 : vector<32x1xf32> to vector<32x512xf32>
    %23 = arith.addf %21, %22 : vector<32x512xf32>
    %cst_12 = arith.constant 0.000000e+00 : f32
    %24 = vector.broadcast %cst_12 : f32 to vector<32x512xf32>
    %25 = arith.maximumf %23, %24 : vector<32x512xf32>
    %26 = arith.truncf %25 : vector<32x512xf32> to vector<32x512xbf16>
    %cst_13 = arith.constant dense<0.000000e+00> : vector<32x512xf32>
    %27 = tpu.matmul %2, %26, %cst_13 {dimension_numbers = #tpu.dot_dimension_numbers<[1], [0], [0], [1], [0, 0, 1, 1], [], []>} : vector<32x32xbf16>, vector<32x512xbf16>, vector<32x512xf32> -> vector<32x512xf32>
    %28 = arith.addf %27, %15 : vector<32x512xf32>
    %29 = vector.broadcast %7 : vector<32x1xf32> to vector<32x512xf32>
    %30 = arith.addf %28, %29 : vector<32x512xf32>
    %cst_14 = arith.constant 0.000000e+00 : f32
    %31 = vector.broadcast %cst_14 : f32 to vector<32x512xf32>
    %32 = arith.maximumf %30, %31 : vector<32x512xf32>
    %cst_15 = arith.constant dense<0.000000e+00> : vector<2x512xf32>
    %33 = tpu.matmul %3, %32, %cst_15 {dimension_numbers = #tpu.dot_dimension_numbers<[1], [0], [0], [1], [0, 0, 1, 1], [], []>} : vector<2x32xf32>, vector<32x512xf32>, vector<2x512xf32> -> vector<2x512xf32>
    %34 = vector.broadcast %8 : vector<2x1xf32> to vector<2x512xf32>
    %35 = arith.addf %33, %34 : vector<2x512xf32>
    %c0_16 = arith.constant 0 : index
    %36 = arith.index_cast %10 : i32 to index
    %37 = vector.load %arg7[%c0_16, %36] : memref<2x1024xf32, #tpu.memory_space<vmem>>, vector<2x512xf32>
    tpu.vector_store %arg7[%c0_16, %36], %35 {strides = array<i32>} : memref<2x1024xf32, #tpu.memory_space<vmem>>, vector<2x512xf32>,
    %c1_i32 = arith.constant 1 : i32
    %c512_i32_17 = arith.constant 512 : i32
    %38 = arith.muli %c1_i32, %c512_i32_17 : i32
    %39 = tpu.assume_multiple %38, 512 : i32
    %40 = arith.index_cast %39 : i32 to index
    %c0_18 = arith.constant 0 : index
    %41 = vector.load %arg1[%40, %c0_18] : memref<1024x3xf32, #tpu.memory_space<vmem>>, vector<512x3xf32>
    %cst_19 = arith.constant dense<0.000000e+00> : vector<64x512xf32>
    %42 = tpu.matmul %0, %41, %cst_19 {dimension_numbers = #tpu.dot_dimension_numbers<[1], [1], [0], [0], [0, 0, 1, 0], [], []>} : vector<64x3xf32>, vector<512x3xf32>, vector<64x512xf32> -> vector<64x512xf32>
    %43 = vector.extract_strided_slice %42 {offsets = [0, 0], sizes = [32, 512], strides = [1, 1]} : vector<64x512xf32> to vector<32x512xf32>
    %44 = vector.extract_strided_slice %42 {offsets = [32, 0], sizes = [32, 512], strides = [1, 1]} : vector<64x512xf32> to vector<32x512xf32>
    %45 = vector.broadcast %5 : vector<32x1xf32> to vector<32x512xf32>
    %46 = arith.addf %43, %45 : vector<32x512xf32>
    %cst_20 = arith.constant 0.000000e+00 : f32
    %47 = vector.broadcast %cst_20 : f32 to vector<32x512xf32>
    %48 = arith.maximumf %46, %47 : vector<32x512xf32>
    %49 = arith.truncf %48 : vector<32x512xf32> to vector<32x512xbf16>
    %cst_21 = arith.constant dense<0.000000e+00> : vector<32x512xf32>
    %50 = tpu.matmul %1, %49, %cst_21 {dimension_numbers = #tpu.dot_dimension_numbers<[1], [0], [0], [1], [0, 0, 1, 1], [], []>} : vector<32x32xbf16>, vector<32x512xbf16>, vector<32x512xf32> -> vector<32x512xf32>
    %51 = vector.broadcast %6 : vector<32x1xf32> to vector<32x512xf32>
    %52 = arith.addf %50, %51 : vector<32x512xf32>
    %cst_22 = arith.constant 0.000000e+00 : f32
    %53 = vector.broadcast %cst_22 : f32 to vector<32x512xf32>
    %54 = arith.maximumf %52, %53 : vector<32x512xf32>
    %55 = arith.truncf %54 : vector<32x512xf32> to vector<32x512xbf16>
    %cst_23 = arith.constant dense<0.000000e+00> : vector<32x512xf32>
    %56 = tpu.matmul %2, %55, %cst_23 {dimension_numbers = #tpu.dot_dimension_numbers<[1], [0], [0], [1], [0, 0, 1, 1], [], []>} : vector<32x32xbf16>, vector<32x512xbf16>, vector<32x512xf32> -> vector<32x512xf32>
    %57 = arith.addf %56, %44 : vector<32x512xf32>
    %58 = vector.broadcast %7 : vector<32x1xf32> to vector<32x512xf32>
    %59 = arith.addf %57, %58 : vector<32x512xf32>
    %cst_24 = arith.constant 0.000000e+00 : f32
    %60 = vector.broadcast %cst_24 : f32 to vector<32x512xf32>
    %61 = arith.maximumf %59, %60 : vector<32x512xf32>
    %cst_25 = arith.constant dense<0.000000e+00> : vector<2x512xf32>
    %62 = tpu.matmul %3, %61, %cst_25 {dimension_numbers = #tpu.dot_dimension_numbers<[1], [0], [0], [1], [0, 0, 1, 1], [], []>} : vector<2x32xf32>, vector<32x512xf32>, vector<2x512xf32> -> vector<2x512xf32>
    %63 = vector.broadcast %8 : vector<2x1xf32> to vector<2x512xf32>
    %64 = arith.addf %62, %63 : vector<2x512xf32>
    %c0_26 = arith.constant 0 : index
    %65 = arith.index_cast %39 : i32 to index
    %66 = vector.load %arg7[%c0_26, %65] : memref<2x1024xf32, #tpu.memory_space<vmem>>, vector<2x512xf32>
    tpu.vector_store %arg7[%c0_26, %65], %64 {strides = array<i32>} : memref<2x1024xf32, #tpu.memory_space<vmem>>, vector<2x512xf32>,
    %c2_i32 = arith.constant 2 : i32
    return
  }
  func.func @transform_0(%arg0: i32) -> (i32, i32) {
    %c0_i32 = arith.constant 0 : i32
    %c0_i32_0 = arith.constant 0 : i32
    return %arg0, %c0_i32 : i32, i32
  }
  func.func @transform_1(%arg0: i32) -> (i32, i32) {
    %c0_i32 = arith.constant 0 : i32
    %c0_i32_0 = arith.constant 0 : i32
    %c0_i32_1 = arith.constant 0 : i32
    return %c0_i32, %c0_i32_0 : i32, i32
  }
  func.func @transform_2(%arg0: i32) -> (i32, i32) {
    %c0_i32 = arith.constant 0 : i32
    %c0_i32_0 = arith.constant 0 : i32
    %c0_i32_1 = arith.constant 0 : i32
    return %c0_i32, %c0_i32_0 : i32, i32
  }
  func.func @transform_3(%arg0: i32) -> (i32, i32) {
    %c0_i32 = arith.constant 0 : i32
    %c0_i32_0 = arith.constant 0 : i32
    %c0_i32_1 = arith.constant 0 : i32
    return %c0_i32, %c0_i32_0 : i32, i32
  }
  func.func @transform_4(%arg0: i32) -> (i32, i32) {
    %c0_i32 = arith.constant 0 : i32
    %c0_i32_0 = arith.constant 0 : i32
    %c0_i32_1 = arith.constant 0 : i32
    return %c0_i32, %c0_i32_0 : i32, i32
  }
  func.func @transform_5(%arg0: i32) -> (i32, i32) {
    %c0_i32 = arith.constant 0 : i32
    %c0_i32_0 = arith.constant 0 : i32
    %c0_i32_1 = arith.constant 0 : i32
    return %c0_i32, %c0_i32_0 : i32, i32
  }
  func.func @transform_6(%arg0: i32) -> (i32, i32) {
    %c0_i32 = arith.constant 0 : i32
    %c0_i32_0 = arith.constant 0 : i32
    return %c0_i32, %arg0 : i32, i32
  }
}

</mosaic_0001>

<llo_original>
// kernel: tpu_custom_call.1
$region0: #{tpu_custom_call.1}
  #allocation0 [shape = 'u32[]', space=smem, size = 0x4, offset = 0x4, fixed_abs, tag = 'smem constant byte address 0x4 - core index']
  #allocation1 [shape = 'u32[144,128]{1,0:T(1,128)}', space=vmem, size = 0x12000, scoped, tag = 'internal scratch']
  %s0 = inlined_call_operand.vmem [shape: f32[1024,3], index: 0, kind: input, shape index: {}]
  %s1 = inlined_call_operand.vmem [shape: f32[64,3], index: 1, kind: input, shape index: {}]
  %s2 = inlined_call_operand.vmem [shape: bf16[32,32], index: 2, kind: input, shape index: {}]
  %s3 = inlined_call_operand.vmem [shape: bf16[32,32], index: 3, kind: input, shape index: {}]
  %s4 = inlined_call_operand.vmem [shape: f32[2,32], index: 4, kind: input, shape index: {}]
  %s5 = inlined_call_operand.vmem [shape: f32[32,4], index: 5, kind: input, shape index: {}]
  %s6 = inlined_call_operand.hbm [shape: f32[2,1024], index: 6, kind: output, shape index: {}]
  %s7 = sld [smem:[#allocation0]]
  $region34: #{tpu_custom_call.1} parent=0
    _
  %s9 = ssub.s32 1, %s7
  %s10 = scalar_select 0, %s9, %s7
  $region1: #{tpu_custom_call.1} parent=0
    #allocation2 [shape = 'u8[8192]{0}', space=vmem, size = 0x2000, scoped, tag = 'output window, operand 0, single buffered']
    #allocation3 [shape = 's32[1]{0}', space=sflag, size = 0x4, scoped, tag = 'scoped memory for tpu_custom_call.1']
    %11 = vsyncpa [#allocation3], 0
    // Predicated region
    $region2: #{tpu_custom_call.1} parent=1 // pred_check
      _
    $region3: #{tpu_custom_call.1} parent=1 // pred_check_branch
      %13 = sbr.rel (0) target = $region5
    $region4: #{tpu_custom_call.1} parent=1 // pred_region
      _
    $region5: #{tpu_custom_call.1} parent=1 // pred_fallthru
      _
    // Predicated region
    $region6: #{tpu_custom_call.1} parent=1 // pred_check
      _
    $region7: #{tpu_custom_call.1} parent=1 // pred_check_branch
      %15 = sbr.rel (0) target = $region9
    $region8: #{tpu_custom_call.1} parent=1 // pred_region
      _
    $region9: #{tpu_custom_call.1} parent=1 // pred_fallthru
      _
    // Predicated region
    $region10: #{tpu_custom_call.1} parent=1 // pred_check
      _
    $region11: #{tpu_custom_call.1} parent=1 // pred_check_branch
      %17 = sbr.rel (0) target = $region13
    $region12: #{tpu_custom_call.1} parent=1 // pred_region
      _
    $region13: #{tpu_custom_call.1} parent=1 // pred_fallthru
      _
    // Predicated region
    $region14: #{tpu_custom_call.1} parent=1 // pred_check
      _
    $region15: #{tpu_custom_call.1} parent=1 // pred_check_branch
      %19 = sbr.rel (0) target = $region17
    $region16: #{tpu_custom_call.1} parent=1 // pred_region
      _
    $region17: #{tpu_custom_call.1} parent=1 // pred_fallthru
      _
    // Predicated region
    $region18: #{tpu_custom_call.1} parent=1 // pred_check
      _
    $region19: #{tpu_custom_call.1} parent=1 // pred_check_branch
      %21 = sbr.rel (0) target = $region21
    $region20: #{tpu_custom_call.1} parent=1 // pred_region
      _
    $region21: #{tpu_custom_call.1} parent=1 // pred_fallthru
      _
    // Predicated region
    $region22: #{tpu_custom_call.1} parent=1 // pred_check
      _
    $region23: #{tpu_custom_call.1} parent=1 // pred_check_branch
      %23 = sbr.rel (0) target = $region25
    $region24: #{tpu_custom_call.1} parent=1 // pred_region
      _
    $region25: #{tpu_custom_call.1} parent=1 // pred_fallthru
      _
    %v25 = vld [vmem:[%s1] sm:$0xff]
    %v26 = vld [vmem:[%s1 + $0x8] sm:$0xff]
    %v27 = vld [vmem:[%s1 + $0x10] sm:$0xff]
    %v28 = vld [vmem:[%s1 + $0x18] sm:$0xff]
    %v29 = vld [vmem:[%s1 + $0x20] sm:$0xff]
    %v30 = vld [vmem:[%s1 + $0x28] sm:$0xff]
    %v31 = vld [vmem:[%s1 + $0x30] sm:$0xff]
    %v32 = vld [vmem:[%s1 + $0x38] sm:$0xff]
    %v33 = vld [vmem:[%s2] sm:$0xf]
    %v34 = vld [vmem:[%s2 + $0x4] sm:$0xf]
    %v35 = vld [vmem:[%s2 + $0x8] sm:$0xf]
    %v36 = vld [vmem:[%s2 + $0xc] sm:$0xf]
    %v37 = vld [vmem:[%s3] sm:$0xf]
    %v38 = vld [vmem:[%s3 + $0x4] sm:$0xf]
    %v39 = vld [vmem:[%s3 + $0x8] sm:$0xf]
    %v40 = vld [vmem:[%s3 + $0xc] sm:$0xf]
    %v41 = vld [vmem:[%s4] sm:$0x3]
    %v42 = vld [vmem:[%s5] sm:$0xff]
    %v43 = vld [vmem:[%s5 + $0x8] sm:$0xff]
    %v44 = vld [vmem:[%s5 + $0x10] sm:$0xff]
    %v45 = vld [vmem:[%s5 + $0x18] sm:$0xff]
    %v46 = vld [vmem:[%s0] sm:$0xff]
    %v47 = vld [vmem:[%s0 + $0x8] sm:$0xff]
    %v48 = vld [vmem:[%s0 + $0x10] sm:$0xff]
    %v49 = vld [vmem:[%s0 + $0x18] sm:$0xff]
    %v50 = vld [vmem:[%s0 + $0x20] sm:$0xff]
    %v51 = vld [vmem:[%s0 + $0x28] sm:$0xff]
    %v52 = vld [vmem:[%s0 + $0x30] sm:$0xff]
    %v53 = vld [vmem:[%s0 + $0x38] sm:$0xff]
    %v54 = vld [vmem:[%s0 + $0x40] sm:$0xff]
    %v55 = vld [vmem:[%s0 + $0x48] sm:$0xff]
    %v56 = vld [vmem:[%s0 + $0x50] sm:$0xff]
    %v57 = vld [vmem:[%s0 + $0x58] sm:$0xff]
    %v58 = vld [vmem:[%s0 + $0x60] sm:$0xff]
    %v59 = vld [vmem:[%s0 + $0x68] sm:$0xff]
    %v60 = vld [vmem:[%s0 + $0x70] sm:$0xff]
    %v61 = vld [vmem:[%s0 + $0x78] sm:$0xff]
    %v62 = vld [vmem:[%s0 + $0x80] sm:$0xff]
    %v63 = vld [vmem:[%s0 + $0x88] sm:$0xff]
    %v64 = vld [vmem:[%s0 + $0x90] sm:$0xff]
    %v65 = vld [vmem:[%s0 + $0x98] sm:$0xff]
    %v66 = vld [vmem:[%s0 + $0xa0] sm:$0xff]
    %v67 = vld [vmem:[%s0 + $0xa8] sm:$0xff]
    %v68 = vld [vmem:[%s0 + $0xb0] sm:$0xff]
    %v69 = vld [vmem:[%s0 + $0xb8] sm:$0xff]
    %v70 = vld [vmem:[%s0 + $0xc0] sm:$0xff]
    %v71 = vld [vmem:[%s0 + $0xc8] sm:$0xff]
    %v72 = vld [vmem:[%s0 + $0xd0] sm:$0xff]
    %v73 = vld [vmem:[%s0 + $0xd8] sm:$0xff]
    %v74 = vld [vmem:[%s0 + $0xe0] sm:$0xff]
    %v75 = vld [vmem:[%s0 + $0xe8] sm:$0xff]
    %v76 = vld [vmem:[%s0 + $0xf0] sm:$0xff]
    %v77 = vld [vmem:[%s0 + $0xf8] sm:$0xff]
    %v78 = vld [vmem:[%s0 + $0x100] sm:$0xff]
    %v79 = vld [vmem:[%s0 + $0x108] sm:$0xff]
    %v80 = vld [vmem:[%s0 + $0x110] sm:$0xff]
    %v81 = vld [vmem:[%s0 + $0x118] sm:$0xff]
    %v82 = vld [vmem:[%s0 + $0x120] sm:$0xff]
    %v83 = vld [vmem:[%s0 + $0x128] sm:$0xff]
    %v84 = vld [vmem:[%s0 + $0x130] sm:$0xff]
    %v85 = vld [vmem:[%s0 + $0x138] sm:$0xff]
    %v86 = vld [vmem:[%s0 + $0x140] sm:$0xff]
    %v87 = vld [vmem:[%s0 + $0x148] sm:$0xff]
    %v88 = vld [vmem:[%s0 + $0x150] sm:$0xff]
    %v89 = vld [vmem:[%s0 + $0x158] sm:$0xff]
    %v90 = vld [vmem:[%s0 + $0x160] sm:$0xff]
    %v91 = vld [vmem:[%s0 + $0x168] sm:$0xff]
    %v92 = vld [vmem:[%s0 + $0x170] sm:$0xff]
    %v93 = vld [vmem:[%s0 + $0x178] sm:$0xff]
    %v94 = vld [vmem:[%s0 + $0x180] sm:$0xff]
    %v95 = vld [vmem:[%s0 + $0x188] sm:$0xff]
    %v96 = vld [vmem:[%s0 + $0x190] sm:$0xff]
    %v97 = vld [vmem:[%s0 + $0x198] sm:$0xff]
    %v98 = vld [vmem:[%s0 + $0x1a0] sm:$0xff]
    %v99 = vld [vmem:[%s0 + $0x1a8] sm:$0xff]
    %v100 = vld [vmem:[%s0 + $0x1b0] sm:$0xff]
    %v101 = vld [vmem:[%s0 + $0x1b8] sm:$0xff]
    %v102 = vld [vmem:[%s0 + $0x1c0] sm:$0xff]
    %v103 = vld [vmem:[%s0 + $0x1c8] sm:$0xff]
    %v104 = vld [vmem:[%s0 + $0x1d0] sm:$0xff]
    %v105 = vld [vmem:[%s0 + $0x1d8] sm:$0xff]
    %v106 = vld [vmem:[%s0 + $0x1e0] sm:$0xff]
    %v107 = vld [vmem:[%s0 + $0x1e8] sm:$0xff]
    %v108 = vld [vmem:[%s0 + $0x1f0] sm:$0xff]
    %v109 = vld [vmem:[%s0 + $0x1f8] sm:$0xff]
    %vm110 = vcmask 23552
    %v112 = vsel %vm110, %v25, 0
    %v115 = vsel %vm110, %v26, 0
    %v118 = vsel %vm110, %v27, 0
    %v121 = vsel %vm110, %v28, 0
    %v124 = vsel %vm110, %v29, 0
    %v127 = vsel %vm110, %v30, 0
    %v130 = vsel %vm110, %v31, 0
    %v133 = vsel %vm110, %v32, 0
    %v136 = vsel %vm110, %v46, 0
    %v139 = vsel %vm110, %v47, 0
    %v142 = vsel %vm110, %v48, 0
    %v145 = vsel %vm110, %v49, 0
    %v148 = vsel %vm110, %v50, 0
    %v151 = vsel %vm110, %v51, 0
    %v154 = vsel %vm110, %v52, 0
    %v157 = vsel %vm110, %v53, 0
    %v160 = vsel %vm110, %v54, 0
    %v163 = vsel %vm110, %v55, 0
    %v166 = vsel %vm110, %v56, 0
    %v169 = vsel %vm110, %v57, 0
    %v172 = vsel %vm110, %v58, 0
    %v175 = vsel %vm110, %v59, 0
    %v178 = vsel %vm110, %v60, 0
    %v181 = vsel %vm110, %v61, 0
    %v184 = vsel %vm110, %v62, 0
    %v187 = vsel %vm110, %v63, 0
    %v190 = vsel %vm110, %v64, 0
    %v193 = vsel %vm110, %v65, 0
    %v196 = vsel %vm110, %v66, 0
    %v199 = vsel %vm110, %v67, 0
    %v202 = vsel %vm110, %v68, 0
    %v205 = vsel %vm110, %v69, 0
    %v208 = vsel %vm110, %v70, 0
    %v211 = vsel %vm110, %v71, 0
    %v214 = vsel %vm110, %v72, 0
    %v217 = vsel %vm110, %v73, 0
    %v220 = vsel %vm110, %v74, 0
    %v223 = vsel %vm110, %v75, 0
    %v226 = vsel %vm110, %v76, 0
    %v229 = vsel %vm110, %v77, 0
    %v232 = vsel %vm110, %v78, 0
    %v235 = vsel %vm110, %v79, 0
    %v238 = vsel %vm110, %v80, 0
    %v241 = vsel %vm110, %v81, 0
    %v244 = vsel %vm110, %v82, 0
    %v247 = vsel %vm110, %v83, 0
    %v250 = vsel %vm110, %v84, 0
    %v253 = vsel %vm110, %v85, 0
    %v256 = vsel %vm110, %v86, 0
    %v259 = vsel %vm110, %v87, 0
    %v262 = vsel %vm110, %v88, 0
    %v265 = vsel %vm110, %v89, 0
    %v268 = vsel %vm110, %v90, 0
    %v271 = vsel %vm110, %v91, 0
    %v274 = vsel %vm110, %v92, 0
    %v277 = vsel %vm110, %v93, 0
    %v280 = vsel %vm110, %v94, 0
    %v283 = vsel %vm110, %v95, 0
    %v286 = vsel %vm110, %v96, 0
    %v289 = vsel %vm110, %v97, 0
    %v292 = vsel %vm110, %v98, 0
    %v295 = vsel %vm110, %v99, 0
    %v298 = vsel %vm110, %v100, 0
    %v301 = vsel %vm110, %v101, 0
    %v304 = vsel %vm110, %v102, 0
    %v307 = vsel %vm110, %v103, 0
    %v310 = vsel %vm110, %v104, 0
    %v313 = vsel %vm110, %v105, 0
    %v316 = vsel %vm110, %v106, 0
    %v319 = vsel %vm110, %v107, 0
    %v322 = vsel %vm110, %v108, 0
    %v325 = vsel %vm110, %v109, 0
    %327 = vmatprep.subr.mxu0 0.0
    %328 = vmatpush1.xpose.msra.mxu0 %v136
    %329 = vmatprep.subr.mxu0 0.0
    %330 = vmatpush1.xpose.msra.mxu0 %v139
    %331 = vmatprep.subr.mxu0 0.0
    %332 = vmatpush1.xpose.msra.mxu0 %v142
    %333 = vmatprep.subr.mxu0 0.0
    %334 = vmatpush1.xpose.msra.mxu0 %v145
    %335 = vmatprep.subr.mxu0 0.0
    %336 = vmatpush1.xpose.msra.mxu0 %v148
    %337 = vmatprep.subr.mxu0 0.0
    %338 = vmatpush1.xpose.msra.mxu0 %v151
    %339 = vmatprep.subr.mxu0 0.0
    %340 = vmatpush1.xpose.msra.mxu0 %v154
    %341 = vmatprep.subr.mxu0 0.0
    %342 = vmatpush1.xpose.msra.mxu0 %v157
    %343 = vmatprep.subr.mxu0 0.0
    %344 = vmatpush1.xpose.msra.mxu0 %v160
    %345 = vmatprep.subr.mxu0 0.0
    %346 = vmatpush1.xpose.msra.mxu0 %v163
    %347 = vmatprep.subr.mxu0 0.0
    %348 = vmatpush1.xpose.msra.mxu0 %v166
    %349 = vmatprep.subr.mxu0 0.0
    %350 = vmatpush1.xpose.msra.mxu0 %v169
    %351 = vmatprep.subr.mxu0 0.0
    %352 = vmatpush1.xpose.msra.mxu0 %v172
    %353 = vmatprep.subr.mxu0 0.0
    %354 = vmatpush1.xpose.msra.mxu0 %v175
    %355 = vmatprep.subr.mxu0 0.0
    %356 = vmatpush1.xpose.msra.mxu0 %v178
    %357 = vmatprep.subr.mxu0 0.0
    %358 = vmatpush1.xpose.msra.mxu0 %v181
    %359 = vmatprep.subr.mxu0 0.0
    %360 = vmatpush1.xpose.msra.mxu0 %v184
    %361 = vmatprep.subr.mxu0 0.0
    %362 = vmatpush1.xpose.msra.mxu0 %v187
    %363 = vmatprep.subr.mxu0 0.0
    %364 = vmatpush1.xpose.msra.mxu0 %v190
    %365 = vmatprep.subr.mxu0 0.0
    %366 = vmatpush1.xpose.msra.mxu0 %v193
    %367 = vmatprep.subr.mxu0 0.0
    %368 = vmatpush1.xpose.msra.mxu0 %v196
    %369 = vmatprep.subr.mxu0 0.0
    %370 = vmatpush1.xpose.msra.mxu0 %v199
    %371 = vmatprep.subr.mxu0 0.0
    %372 = vmatpush1.xpose.msra.mxu0 %v202
    %373 = vmatprep.subr.mxu0 0.0
    %374 = vmatpush1.xpose.msra.mxu0 %v205
    %375 = vmatprep.subr.mxu0 0.0
    %376 = vmatpush1.xpose.msra.mxu0 %v208
    %377 = vmatprep.subr.mxu0 0.0
    %378 = vmatpush1.xpose.msra.mxu0 %v211
    %379 = vmatprep.subr.mxu0 0.0
    %380 = vmatpush1.xpose.msra.mxu0 %v214
    %381 = vmatprep.subr.mxu0 0.0
    %382 = vmatpush1.xpose.msra.mxu0 %v217
    %383 = vmatprep.subr.mxu0 0.0
    %384 = vmatpush1.xpose.msra.mxu0 %v220
    %385 = vmatprep.subr.mxu0 0.0
    %386 = vmatpush1.xpose.msra.mxu0 %v223
    %387 = vmatprep.subr.mxu0 0.0
    %388 = vmatpush1.xpose.msra.mxu0 %v226
    %389 = vmatprep.subr.mxu0 0.0
    %390 = vmatpush1.xpose.msra.mxu0 %v229
    %391 = vmatprep.mubr.f32.mxu0 0.0
    %392 = vmatmul.mubr.f32.gmra.mrb[0].mxu0 %v112
    %v393 = vpop.f32.mrb[0].mxu0
    %v394 = vadd.f32 0.0, %v393
    %v395 = vpop.f32.mrb[0].mxu0
    %v396 = vadd.f32 0.0, %v395
    %397 = vmatprep.mubr.f32.mxu0 0.0
    %398 = vmatmul.mubr.f32.gmra.mrb[0].mxu0 %v115
    %v399 = vpop.f32.mrb[0].mxu0
    %v400 = vadd.f32 0.0, %v399
    %v401 = vpop.f32.mrb[0].mxu0
    %v402 = vadd.f32 0.0, %v401
    %403 = vmatprep.mubr.f32.mxu0 0.0
    %404 = vmatmul.mubr.f32.gmra.mrb[0].mxu0 %v118
    %v405 = vpop.f32.mrb[0].mxu0
    %v406 = vadd.f32 0.0, %v405
    %v407 = vpop.f32.mrb[0].mxu0
    %v408 = vadd.f32 0.0, %v407
    %409 = vmatprep.mubr.f32.mxu0 0.0
    %410 = vmatmul.mubr.f32.gmra.mrb[0].mxu0 %v121
    %v411 = vpop.f32.mrb[0].mxu0
    %v412 = vadd.f32 0.0, %v411
    %v413 = vpop.f32.mrb[0].mxu0
    %v414 = vadd.f32 0.0, %v413
    %415 = vmatprep.mubr.f32.mxu0 0.0
    %416 = vmatmul.mubr.f32.gmra.mrb[0].mxu0 %v124
    %v417 = vpop.f32.mrb[0].mxu0
    %v418 = vadd.f32 0.0, %v417
    %v419 = vpop.f32.mrb[0].mxu0
    %v420 = vadd.f32 0.0, %v419
    %421 = vmatprep.mubr.f32.mxu0 0.0
    %422 = vmatmul.mubr.f32.gmra.mrb[0].mxu0 %v127
    %v423 = vpop.f32.mrb[0].mxu0
    %v424 = vadd.f32 0.0, %v423
    %v425 = vpop.f32.mrb[0].mxu0
    %v426 = vadd.f32 0.0, %v425
    %427 = vmatprep.mubr.f32.mxu0 0.0
    %428 = vmatmul.mubr.f32.gmra.mrb[0].mxu0 %v130
    %v429 = vpop.f32.mrb[0].mxu0
    %v430 = vadd.f32 0.0, %v429
    %v431 = vpop.f32.mrb[0].mxu0
    %v432 = vadd.f32 0.0, %v431
    %433 = vmatprep.mubr.f32.mxu0 0.0
    %434 = vmatmul.mubr.f32.gmra.mrb[0].mxu0 %v133
    %v435 = vpop.f32.mrb[0].mxu0
    %v436 = vadd.f32 0.0, %v435
    %v437 = vpop.f32.mrb[0].mxu0
    %v438 = vadd.f32 0.0, %v437
    %439 = vdwg.mxu0
    %440 = vmatprep.subr.mxu0 0.0
    %441 = vmatpush1.xpose.msra.mxu0 %v232
    %442 = vmatprep.subr.mxu0 0.0
    %443 = vmatpush1.xpose.msra.mxu0 %v235
    %444 = vmatprep.subr.mxu0 0.0
    %445 = vmatpush1.xpose.msra.mxu0 %v238
    %446 = vmatprep.subr.mxu0 0.0
    %447 = vmatpush1.xpose.msra.mxu0 %v241
    %448 = vmatprep.subr.mxu0 0.0
    %449 = vmatpush1.xpose.msra.mxu0 %v244
    %450 = vmatprep.subr.mxu0 0.0
    %451 = vmatpush1.xpose.msra.mxu0 %v247
    %452 = vmatprep.subr.mxu0 0.0
    %453 = vmatpush1.xpose.msra.mxu0 %v250
    %454 = vmatprep.subr.mxu0 0.0
    %455 = vmatpush1.xpose.msra.mxu0 %v253
    %456 = vmatprep.subr.mxu0 0.0
    %457 = vmatpush1.xpose.msra.mxu0 %v256
    %458 = vmatprep.subr.mxu0 0.0
    %459 = vmatpush1.xpose.msra.mxu0 %v259
    %460 = vmatprep.subr.mxu0 0.0
    %461 = vmatpush1.xpose.msra.mxu0 %v262
    %462 = vmatprep.subr.mxu0 0.0
    %463 = vmatpush1.xpose.msra.mxu0 %v265
    %464 = vmatprep.subr.mxu0 0.0
    %465 = vmatpush1.xpose.msra.mxu0 %v268
    %466 = vmatprep.subr.mxu0 0.0
    %467 = vmatpush1.xpose.msra.mxu0 %v271
    %468 = vmatprep.subr.mxu0 0.0
    %469 = vmatpush1.xpose.msra.mxu0 %v274
    %470 = vmatprep.subr.mxu0 0.0
    %471 = vmatpush1.xpose.msra.mxu0 %v277
    %472 = vmatprep.subr.mxu0 0.0
    %473 = vmatpush1.xpose.msra.mxu0 %v280
    %474 = vmatprep.subr.mxu0 0.0
    %475 = vmatpush1.xpose.msra.mxu0 %v283
    %476 = vmatprep.subr.mxu0 0.0
    %477 = vmatpush1.xpose.msra.mxu0 %v286
    %478 = vmatprep.subr.mxu0 0.0
    %479 = vmatpush1.xpose.msra.mxu0 %v289
    %480 = vmatprep.subr.mxu0 0.0
    %481 = vmatpush1.xpose.msra.mxu0 %v292
    %482 = vmatprep.subr.mxu0 0.0
    %483 = vmatpush1.xpose.msra.mxu0 %v295
    %484 = vmatprep.subr.mxu0 0.0
    %485 = vmatpush1.xpose.msra.mxu0 %v298
    %486 = vmatprep.subr.mxu0 0.0
    %487 = vmatpush1.xpose.msra.mxu0 %v301
    %488 = vmatprep.subr.mxu0 0.0
    %489 = vmatpush1.xpose.msra.mxu0 %v304
    %490 = vmatprep.subr.mxu0 0.0
    %491 = vmatpush1.xpose.msra.mxu0 %v307
    %492 = vmatprep.subr.mxu0 0.0
    %493 = vmatpush1.xpose.msra.mxu0 %v310
    %494 = vmatprep.subr.mxu0 0.0
    %495 = vmatpush1.xpose.msra.mxu0 %v313
    %496 = vmatprep.subr.mxu0 0.0
    %497 = vmatpush1.xpose.msra.mxu0 %v316
    %498 = vmatprep.subr.mxu0 0.0
    %499 = vmatpush1.xpose.msra.mxu0 %v319
    %500 = vmatprep.subr.mxu0 0.0
    %501 = vmatpush1.xpose.msra.mxu0 %v322
    %502 = vmatprep.subr.mxu0 0.0
    %503 = vmatpush1.xpose.msra.mxu0 %v325
    %504 = vmatprep.mubr.f32.mxu0 0.0
    %505 = vmatmul.mubr.f32.gmra.mrb[0].mxu0 %v112
    %v506 = vpop.f32.mrb[0].mxu0
    %v507 = vadd.f32 0.0, %v506
    %v508 = vpop.f32.mrb[0].mxu0
    %v509 = vadd.f32 0.0, %v508
    %510 = vmatprep.mubr.f32.mxu0 0.0
    %511 = vmatmul.mubr.f32.gmra.mrb[0].mxu0 %v115
    %v512 = vpop.f32.mrb[0].mxu0
    %v513 = vadd.f32 0.0, %v512
    %v514 = vpop.f32.mrb[0].mxu0
    %v515 = vadd.f32 0.0, %v514
    %516 = vmatprep.mubr.f32.mxu0 0.0
    %517 = vmatmul.mubr.f32.gmra.mrb[0].mxu0 %v118
    %v518 = vpop.f32.mrb[0].mxu0
    %v519 = vadd.f32 0.0, %v518
    %v520 = vpop.f32.mrb[0].mxu0
    %v521 = vadd.f32 0.0, %v520
    %522 = vmatprep.mubr.f32.mxu0 0.0
    %523 = vmatmul.mubr.f32.gmra.mrb[0].mxu0 %v121
    %v524 = vpop.f32.mrb[0].mxu0
    %v525 = vadd.f32 0.0, %v524
    %v526 = vpop.f32.mrb[0].mxu0
    %v527 = vadd.f32 0.0, %v526
    %528 = vmatprep.mubr.f32.mxu0 0.0
    %529 = vmatmul.mubr.f32.gmra.mrb[0].mxu0 %v124
    %v530 = vpop.f32.mrb[0].mxu0
    %v531 = vadd.f32 0.0, %v530
    %v532 = vpop.f32.mrb[0].mxu0
    %v533 = vadd.f32 0.0, %v532
    %534 = vmatprep.mubr.f32.mxu0 0.0
    %535 = vmatmul.mubr.f32.gmra.mrb[0].mxu0 %v127
    %v536 = vpop.f32.mrb[0].mxu0
    %v537 = vadd.f32 0.0, %v536
    %v538 = vpop.f32.mrb[0].mxu0
    %v539 = vadd.f32 0.0, %v538
    %540 = vmatprep.mubr.f32.mxu0 0.0
    %541 = vmatmul.mubr.f32.gmra.mrb[0].mxu0 %v130
    %v542 = vpop.f32.mrb[0].mxu0
    %v543 = vadd.f32 0.0, %v542
    %v544 = vpop.f32.mrb[0].mxu0
    %v545 = vadd.f32 0.0, %v544
    %546 = vmatprep.mubr.f32.mxu0 0.0
    %547 = vmatmul.mubr.f32.gmra.mrb[0].mxu0 %v133
    %v548 = vpop.f32.mrb[0].mxu0
    %v549 = vadd.f32 0.0, %v548
    %v550 = vpop.f32.mrb[0].mxu0
    %v551 = vadd.f32 0.0, %v550
    %552 = vdwg.mxu0
    %554 = vset.pattern.permute.xlu0 0
    %555 = vperm.xlu0 %554, %v42
    %v556 = vpop.permute.xlu0 %555
    %559 = vset.pattern.permute.xlu0 0
    %560 = vperm.xlu0 %559, %v43
    %v561 = vpop.permute.xlu0 %560
    %564 = vset.pattern.permute.xlu0 0
    %565 = vperm.xlu0 %564, %v44
    %v566 = vpop.permute.xlu0 %565
    %569 = vset.pattern.permute.xlu0 0
    %570 = vperm.xlu0 %569, %v45
    %v571 = vpop.permute.xlu0 %570
    %v573 = vadd.f32 %v394, %v556
    %v574 = vadd.f32 %v396, %v556
    %v575 = vadd.f32 %v507, %v556
    %v576 = vadd.f32 %v509, %v556
    %v577 = vadd.f32 %v400, %v561
    %v578 = vadd.f32 %v402, %v561
    %v579 = vadd.f32 %v513, %v561
    %v580 = vadd.f32 %v515, %v561
    %v581 = vadd.f32 %v406, %v566
    %v582 = vadd.f32 %v408, %v566
    %v583 = vadd.f32 %v519, %v566
    %v584 = vadd.f32 %v521, %v566
    %v585 = vadd.f32 %v412, %v571
    %v586 = vadd.f32 %v414, %v571
    %v587 = vadd.f32 %v525, %v571
    %v588 = vadd.f32 %v527, %v571
    %v589 = vmax.f32 %v573, 0.0
    %v590 = vmax.f32 %v574, 0.0
    %v591 = vmax.f32 %v575, 0.0
    %v592 = vmax.f32 %v576, 0.0
    %v593 = vmax.f32 %v577, 0.0
    %v594 = vmax.f32 %v578, 0.0
    %v595 = vmax.f32 %v579, 0.0
    %v596 = vmax.f32 %v580, 0.0
    %v597 = vmax.f32 %v581, 0.0
    %v598 = vmax.f32 %v582, 0.0
    %v599 = vmax.f32 %v583, 0.0
    %v600 = vmax.f32 %v584, 0.0
    %v601 = vmax.f32 %v585, 0.0
    %v602 = vmax.f32 %v586, 0.0
    %v603 = vmax.f32 %v587, 0.0
    %v604 = vmax.f32 %v588, 0.0
    %v605 = vpack.c.bf16 %v593, %v589
    %v606 = vpack.c.bf16 %v594, %v590
    %v607 = vpack.c.bf16 %v595, %v591
    %v608 = vpack.c.bf16 %v596, %v592
    %v609 = vpack.c.bf16 %v601, %v597
    %v610 = vpack.c.bf16 %v602, %v598
    %v611 = vpack.c.bf16 %v603, %v599
    %v612 = vpack.c.bf16 %v604, %v600
    %613 = vset.pattern.permute.xlu0 1
    %614 = vperm.xlu0 %613, %v42
    %v615 = vpop.permute.xlu0 %614
    %617 = vset.pattern.permute.xlu0 1
    %618 = vperm.xlu0 %617, %v43
    %v619 = vpop.permute.xlu0 %618
    %621 = vset.pattern.permute.xlu0 1
    %622 = vperm.xlu0 %621, %v44
    %v623 = vpop.permute.xlu0 %622
    %625 = vset.pattern.permute.xlu0 1
    %626 = vperm.xlu0 %625, %v45
    %v627 = vpop.permute.xlu0 %626
    %v633 = vunpack.c.l.b16 %v33
    %v634 = vunpack.c.l.b16 %v34
    %v635 = vunpack.c.l.b16 %v35
    %v636 = vunpack.c.l.b16 %v36
    %v637 = vpack.c.b16 %v634, %v633
    %v638 = vpack.c.b16 %v636, %v635
    %vm639 = vcmask 261120
    %v641 = vsel %vm639, %v637, 0
    %v644 = vsel %vm639, %v638, 0
    %646 = vmatprep.subr.bf16.mxu0 %v606
    %647 = vmatpush1.bf16.msra.mxu0 %v605
    %648 = vmatprep.subr.bf16.mxu0 %v610
    %649 = vmatpush1.bf16.msra.mxu0 %v609
    %650 = vmatprep.subr.bf16.mxu0 0
    %651 = vmatpush1.bf16.msra.mxu0 0
    %652 = vmatprep.subr.bf16.mxu0 0
    %653 = vmatpush1.bf16.msra.mxu0 0
    %654 = vmatprep.subr.bf16.mxu0 0
    %655 = vmatpush1.bf16.msra.mxu0 0
    %656 = vmatprep.subr.bf16.mxu0 0
    %657 = vmatpush1.bf16.msra.mxu0 0
    %658 = vmatprep.subr.bf16.mxu0 0
    %659 = vmatpush1.bf16.msra.mxu0 0
    %660 = vmatprep.subr.bf16.mxu0 0
    %661 = vmatpush1.bf16.msra.mxu0 0
    %662 = vmatprep.subr.bf16.mxu0 0
    %663 = vmatpush1.bf16.msra.mxu0 0
    %664 = vmatprep.subr.bf16.mxu0 0
    %665 = vmatpush1.bf16.msra.mxu0 0
    %666 = vmatprep.subr.bf16.mxu0 0
    %667 = vmatpush1.bf16.msra.mxu0 0
    %668 = vmatprep.subr.bf16.mxu0 0
    %669 = vmatpush1.bf16.msra.mxu0 0
    %670 = vmatprep.subr.bf16.mxu0 0
    %671 = vmatpush1.bf16.msra.mxu0 0
    %672 = vmatprep.subr.bf16.mxu0 0
    %673 = vmatpush1.bf16.msra.mxu0 0
    %674 = vmatprep.subr.bf16.mxu0 0
    %675 = vmatpush1.bf16.msra.mxu0 0
    %676 = vmatprep.subr.bf16.mxu0 0
    %677 = vmatpush1.bf16.msra.mxu0 0
    %678 = vmatprep.mubr.bf16.mxu0 0
    %679 = vmatmul.mubr.bf16.gmra.mrb[0].mxu0 %v641
    %v680 = vpop.f32.mrb[0].mxu0
    %v681 = vadd.f32 %v615, %v680
    %v682 = vpop.f32.mrb[0].mxu0
    %v683 = vadd.f32 %v615, %v682
    %v684 = vpop.f32.mrb[0].mxu0
    %v685 = vadd.f32 %v619, %v684
    %v686 = vpop.f32.mrb[0].mxu0
    %v687 = vadd.f32 %v619, %v686
    %688 = vmatprep.mubr.bf16.mxu0 0
    %689 = vmatmul.mubr.bf16.gmra.mrb[0].mxu0 %v644
    %v690 = vpop.f32.mrb[0].mxu0
    %v691 = vadd.f32 %v623, %v690
    %v692 = vpop.f32.mrb[0].mxu0
    %v693 = vadd.f32 %v623, %v692
    %v694 = vpop.f32.mrb[0].mxu0
    %v695 = vadd.f32 %v627, %v694
    %v696 = vpop.f32.mrb[0].mxu0
    %v697 = vadd.f32 %v627, %v696
    %698 = vdwg.mxu0
    %699 = vmatprep.subr.bf16.mxu0 %v608
    %700 = vmatpush1.bf16.msra.mxu0 %v607
    %701 = vmatprep.subr.bf16.mxu0 %v612
    %702 = vmatpush1.bf16.msra.mxu0 %v611
    %703 = vmatprep.subr.bf16.mxu0 0
    %704 = vmatpush1.bf16.msra.mxu0 0
    %705 = vmatprep.subr.bf16.mxu0 0
    %706 = vmatpush1.bf16.msra.mxu0 0
    %707 = vmatprep.subr.bf16.mxu0 0
    %708 = vmatpush1.bf16.msra.mxu0 0
    %709 = vmatprep.subr.bf16.mxu0 0
    %710 = vmatpush1.bf16.msra.mxu0 0
    %711 = vmatprep.subr.bf16.mxu0 0
    %712 = vmatpush1.bf16.msra.mxu0 0
    %713 = vmatprep.subr.bf16.mxu0 0
    %714 = vmatpush1.bf16.msra.mxu0 0
    %715 = vmatprep.subr.bf16.mxu0 0
    %716 = vmatpush1.bf16.msra.mxu0 0
    %717 = vmatprep.subr.bf16.mxu0 0
    %718 = vmatpush1.bf16.msra.mxu0 0
    %719 = vmatprep.subr.bf16.mxu0 0
    %720 = vmatpush1.bf16.msra.mxu0 0
    %721 = vmatprep.subr.bf16.mxu0 0
    %722 = vmatpush1.bf16.msra.mxu0 0
    %723 = vmatprep.subr.bf16.mxu0 0
    %724 = vmatpush1.bf16.msra.mxu0 0
    %725 = vmatprep.subr.bf16.mxu0 0
    %726 = vmatpush1.bf16.msra.mxu0 0
    %727 = vmatprep.subr.bf16.mxu0 0
    %728 = vmatpush1.bf16.msra.mxu0 0
    %729 = vmatprep.subr.bf16.mxu0 0
    %730 = vmatpush1.bf16.msra.mxu0 0
    %731 = vmatprep.mubr.bf16.mxu0 0
    %732 = vmatmul.mubr.bf16.gmra.mrb[0].mxu0 %v641
    %v733 = vpop.f32.mrb[0].mxu0
    %v734 = vadd.f32 %v615, %v733
    %v735 = vpop.f32.mrb[0].mxu0
    %v736 = vadd.f32 %v615, %v735
    %v737 = vpop.f32.mrb[0].mxu0
    %v738 = vadd.f32 %v619, %v737
    %v739 = vpop.f32.mrb[0].mxu0
    %v740 = vadd.f32 %v619, %v739
    %741 = vmatprep.mubr.bf16.mxu0 0
    %742 = vmatmul.mubr.bf16.gmra.mrb[0].mxu0 %v644
    %v743 = vpop.f32.mrb[0].mxu0
    %v744 = vadd.f32 %v623, %v743
    %v745 = vpop.f32.mrb[0].mxu0
    %v746 = vadd.f32 %v623, %v745
    %v747 = vpop.f32.mrb[0].mxu0
    %v748 = vadd.f32 %v627, %v747
    %v749 = vpop.f32.mrb[0].mxu0
    %v750 = vadd.f32 %v627, %v749
    %751 = vdwg.mxu0
    %v752 = vmax.f32 %v681, 0.0
    %v753 = vmax.f32 %v683, 0.0
    %v754 = vmax.f32 %v734, 0.0
    %v755 = vmax.f32 %v736, 0.0
    %v756 = vmax.f32 %v685, 0.0
    %v757 = vmax.f32 %v687, 0.0
    %v758 = vmax.f32 %v738, 0.0
    %v759 = vmax.f32 %v740, 0.0
    %v760 = vmax.f32 %v691, 0.0
    %v761 = vmax.f32 %v693, 0.0
    %v762 = vmax.f32 %v744, 0.0
    %v763 = vmax.f32 %v746, 0.0
    %v764 = vmax.f32 %v695, 0.0
    %v765 = vmax.f32 %v697, 0.0
    %v766 = vmax.f32 %v748, 0.0
    %v767 = vmax.f32 %v750, 0.0
    %v768 = vpack.c.bf16 %v756, %v752
    %v769 = vpack.c.bf16 %v757, %v753
    %v770 = vpack.c.bf16 %v758, %v754
    %v771 = vpack.c.bf16 %v759, %v755
    %v772 = vpack.c.bf16 %v764, %v760
    %v773 = vpack.c.bf16 %v765, %v761
    %v774 = vpack.c.bf16 %v766, %v762
    %v775 = vpack.c.bf16 %v767, %v763
    %v780 = vunpack.c.l.b16 %v37
    %v781 = vunpack.c.l.b16 %v38
    %v782 = vunpack.c.l.b16 %v39
    %v783 = vunpack.c.l.b16 %v40
    %v784 = vpack.c.b16 %v781, %v780
    %v785 = vpack.c.b16 %v783, %v782
    %v787 = vsel %vm639, %v784, 0
    %v790 = vsel %vm639, %v785, 0
    %792 = vmatprep.subr.bf16.mxu0 %v769
    %793 = vmatpush1.bf16.msra.mxu0 %v768
    %794 = vmatprep.subr.bf16.mxu0 %v773
    %795 = vmatpush1.bf16.msra.mxu0 %v772
    %796 = vmatprep.subr.bf16.mxu0 0
    %797 = vmatpush1.bf16.msra.mxu0 0
    %798 = vmatprep.subr.bf16.mxu0 0
    %799 = vmatpush1.bf16.msra.mxu0 0
    %800 = vmatprep.subr.bf16.mxu0 0
    %801 = vmatpush1.bf16.msra.mxu0 0
    %802 = vmatprep.subr.bf16.mxu0 0
    %803 = vmatpush1.bf16.msra.mxu0 0
    %804 = vmatprep.subr.bf16.mxu0 0
    %805 = vmatpush1.bf16.msra.mxu0 0
    %806 = vmatprep.subr.bf16.mxu0 0
    %807 = vmatpush1.bf16.msra.mxu0 0
    %808 = vmatprep.subr.bf16.mxu0 0
    %809 = vmatpush1.bf16.msra.mxu0 0
    %810 = vmatprep.subr.bf16.mxu0 0
    %811 = vmatpush1.bf16.msra.mxu0 0
    %812 = vmatprep.subr.bf16.mxu0 0
    %813 = vmatpush1.bf16.msra.mxu0 0
    %814 = vmatprep.subr.bf16.mxu0 0
    %815 = vmatpush1.bf16.msra.mxu0 0
    %816 = vmatprep.subr.bf16.mxu0 0
    %817 = vmatpush1.bf16.msra.mxu0 0
    %818 = vmatprep.subr.bf16.mxu0 0
    %819 = vmatpush1.bf16.msra.mxu0 0
    %820 = vmatprep.subr.bf16.mxu0 0
    %821 = vmatpush1.bf16.msra.mxu0 0
    %822 = vmatprep.subr.bf16.mxu0 0
    %823 = vmatpush1.bf16.msra.mxu0 0
    %824 = vmatprep.mubr.bf16.mxu0 0
    %825 = vmatmul.mubr.bf16.gmra.mrb[0].mxu0 %v787
    %v826 = vpop.f32.mrb[0].mxu0
    %v827 = vadd.f32 %v418, %v826
    %v828 = vpop.f32.mrb[0].mxu0
    %v829 = vadd.f32 %v420, %v828
    %v830 = vpop.f32.mrb[0].mxu0
    %v831 = vadd.f32 %v424, %v830
    %v832 = vpop.f32.mrb[0].mxu0
    %v833 = vadd.f32 %v426, %v832
    %834 = vmatprep.mubr.bf16.mxu0 0
    %835 = vmatmul.mubr.bf16.gmra.mrb[0].mxu0 %v790
    %v836 = vpop.f32.mrb[0].mxu0
    %v837 = vadd.f32 %v430, %v836
    %v838 = vpop.f32.mrb[0].mxu0
    %v839 = vadd.f32 %v432, %v838
    %v840 = vpop.f32.mrb[0].mxu0
    %v841 = vadd.f32 %v436, %v840
    %v842 = vpop.f32.mrb[0].mxu0
    %v843 = vadd.f32 %v438, %v842
    %844 = vdwg.mxu0
    %845 = vmatprep.subr.bf16.mxu0 %v771
    %846 = vmatpush1.bf16.msra.mxu0 %v770
    %847 = vmatprep.subr.bf16.mxu0 %v775
    %848 = vmatpush1.bf16.msra.mxu0 %v774
    %849 = vmatprep.subr.bf16.mxu0 0
    %850 = vmatpush1.bf16.msra.mxu0 0
    %851 = vmatprep.subr.bf16.mxu0 0
    %852 = vmatpush1.bf16.msra.mxu0 0
    %853 = vmatprep.subr.bf16.mxu0 0
    %854 = vmatpush1.bf16.msra.mxu0 0
    %855 = vmatprep.subr.bf16.mxu0 0
    %856 = vmatpush1.bf16.msra.mxu0 0
    %857 = vmatprep.subr.bf16.mxu0 0
    %858 = vmatpush1.bf16.msra.mxu0 0
    %859 = vmatprep.subr.bf16.mxu0 0
    %860 = vmatpush1.bf16.msra.mxu0 0
    %861 = vmatprep.subr.bf16.mxu0 0
    %862 = vmatpush1.bf16.msra.mxu0 0
    %863 = vmatprep.subr.bf16.mxu0 0
    %864 = vmatpush1.bf16.msra.mxu0 0
    %865 = vmatprep.subr.bf16.mxu0 0
    %866 = vmatpush1.bf16.msra.mxu0 0
    %867 = vmatprep.subr.bf16.mxu0 0
    %868 = vmatpush1.bf16.msra.mxu0 0
    %869 = vmatprep.subr.bf16.mxu0 0
    %870 = vmatpush1.bf16.msra.mxu0 0
    %871 = vmatprep.subr.bf16.mxu0 0
    %872 = vmatpush1.bf16.msra.mxu0 0
    %873 = vmatprep.subr.bf16.mxu0 0
    %874 = vmatpush1.bf16.msra.mxu0 0
    %875 = vmatprep.subr.bf16.mxu0 0
    %876 = vmatpush1.bf16.msra.mxu0 0
    %877 = vmatprep.mubr.bf16.mxu0 0
    %878 = vmatmul.mubr.bf16.gmra.mrb[0].mxu0 %v787
    %v879 = vpop.f32.mrb[0].mxu0
    %v880 = vadd.f32 %v531, %v879
    %v881 = vpop.f32.mrb[0].mxu0
    %v882 = vadd.f32 %v533, %v881
    %v883 = vpop.f32.mrb[0].mxu0
    %v884 = vadd.f32 %v537, %v883
    %v885 = vpop.f32.mrb[0].mxu0
    %v886 = vadd.f32 %v539, %v885
    %887 = vmatprep.mubr.bf16.mxu0 0
    %888 = vmatmul.mubr.bf16.gmra.mrb[0].mxu0 %v790
    %v889 = vpop.f32.mrb[0].mxu0
    %v890 = vadd.f32 %v543, %v889
    %v891 = vpop.f32.mrb[0].mxu0
    %v892 = vadd.f32 %v545, %v891
    %v893 = vpop.f32.mrb[0].mxu0
    %v894 = vadd.f32 %v549, %v893
    %v895 = vpop.f32.mrb[0].mxu0
    %v896 = vadd.f32 %v551, %v895
    %897 = vdwg.mxu0
    %898 = vset.pattern.permute.xlu0 2
    %899 = vperm.xlu0 %898, %v42
    %v900 = vpop.permute.xlu0 %899
    %902 = vset.pattern.permute.xlu0 2
    %903 = vperm.xlu0 %902, %v43
    %v904 = vpop.permute.xlu0 %903
    %906 = vset.pattern.permute.xlu0 2
    %907 = vperm.xlu0 %906, %v44
    %v908 = vpop.permute.xlu0 %907
    %910 = vset.pattern.permute.xlu0 2
    %911 = vperm.xlu0 %910, %v45
    %v912 = vpop.permute.xlu0 %911
    %v914 = vadd.f32 %v827, %v900
    %v915 = vadd.f32 %v829, %v900
    %v916 = vadd.f32 %v880, %v900
    %v917 = vadd.f32 %v882, %v900
    %v918 = vadd.f32 %v831, %v904
    %v919 = vadd.f32 %v833, %v904
    %v920 = vadd.f32 %v884, %v904
    %v921 = vadd.f32 %v886, %v904
    %v922 = vadd.f32 %v837, %v908
    %v923 = vadd.f32 %v839, %v908
    %v924 = vadd.f32 %v890, %v908
    %v925 = vadd.f32 %v892, %v908
    %v926 = vadd.f32 %v841, %v912
    %v927 = vadd.f32 %v843, %v912
    %v928 = vadd.f32 %v894, %v912
    %v929 = vadd.f32 %v896, %v912
    %v930 = vmax.f32 %v914, 0.0
    %v931 = vmax.f32 %v915, 0.0
    %v932 = vmax.f32 %v916, 0.0
    %v933 = vmax.f32 %v917, 0.0
    %v934 = vmax.f32 %v918, 0.0
    %v935 = vmax.f32 %v919, 0.0
    %v936 = vmax.f32 %v920, 0.0
    %v937 = vmax.f32 %v921, 0.0
    %v938 = vmax.f32 %v922, 0.0
    %v939 = vmax.f32 %v923, 0.0
    %v940 = vmax.f32 %v924, 0.0
    %v941 = vmax.f32 %v925, 0.0
    %v942 = vmax.f32 %v926, 0.0
    %v943 = vmax.f32 %v927, 0.0
    %v944 = vmax.f32 %v928, 0.0
    %v945 = vmax.f32 %v929, 0.0
    %946 = vset.pattern.permute.xlu0 3
    %947 = vperm.xlu0 %946, %v42
    %v948 = vpop.permute.xlu0 %947
    %v951 = vsel %vm639, %v41, 0
    %953 = vmatprep.subr.mxu0 %v931
    %954 = vmatpush1.msra.mxu0 %v930
    %955 = vmatprep.subr.mxu0 %v935
    %956 = vmatpush1.msra.mxu0 %v934
    %957 = vmatprep.subr.mxu0 %v939
    %958 = vmatpush1.msra.mxu0 %v938
    %959 = vmatprep.subr.mxu0 %v943
    %960 = vmatpush1.msra.mxu0 %v942
    %961 = vmatprep.subr.mxu0 0.0
    %962 = vmatpush1.msra.mxu0 0.0
    %963 = vmatprep.subr.mxu0 0.0
    %964 = vmatpush1.msra.mxu0 0.0
    %965 = vmatprep.subr.mxu0 0.0
    %966 = vmatpush1.msra.mxu0 0.0
    %967 = vmatprep.subr.mxu0 0.0
    %968 = vmatpush1.msra.mxu0 0.0
    %969 = vmatprep.subr.mxu0 0.0
    %970 = vmatpush1.msra.mxu0 0.0
    %971 = vmatprep.subr.mxu0 0.0
    %972 = vmatpush1.msra.mxu0 0.0
    %973 = vmatprep.subr.mxu0 0.0
    %974 = vmatpush1.msra.mxu0 0.0
    %975 = vmatprep.subr.mxu0 0.0
    %976 = vmatpush1.msra.mxu0 0.0
    %977 = vmatprep.subr.mxu0 0.0
    %978 = vmatpush1.msra.mxu0 0.0
    %979 = vmatprep.subr.mxu0 0.0
    %980 = vmatpush1.msra.mxu0 0.0
    %981 = vmatprep.subr.mxu0 0.0
    %982 = vmatpush1.msra.mxu0 0.0
    %983 = vmatprep.subr.mxu0 0.0
    %984 = vmatpush1.msra.mxu0 0.0
    %985 = vmatprep.subr.mxu0 0.0
    %986 = vmatpush1.msra.mxu0 0.0
    %987 = vmatprep.subr.mxu0 0.0
    %988 = vmatpush1.msra.mxu0 0.0
    %989 = vmatprep.subr.mxu0 0.0
    %990 = vmatpush1.msra.mxu0 0.0
    %991 = vmatprep.subr.mxu0 0.0
    %992 = vmatpush1.msra.mxu0 0.0
    %993 = vmatprep.subr.mxu0 0.0
    %994 = vmatpush1.msra.mxu0 0.0
    %995 = vmatprep.subr.mxu0 0.0
    %996 = vmatpush1.msra.mxu0 0.0
    %997 = vmatprep.subr.mxu0 0.0
    %998 = vmatpush1.msra.mxu0 0.0
    %999 = vmatprep.subr.mxu0 0.0
    %1000 = vmatpush1.msra.mxu0 0.0
    %1001 = vmatprep.subr.mxu0 0.0
    %1002 = vmatpush1.msra.mxu0 0.0
    %1003 = vmatprep.subr.mxu0 0.0
    %1004 = vmatpush1.msra.mxu0 0.0
    %1005 = vmatprep.subr.mxu0 0.0
    %1006 = vmatpush1.msra.mxu0 0.0
    %1007 = vmatprep.subr.mxu0 0.0
    %1008 = vmatpush1.msra.mxu0 0.0
    %1009 = vmatprep.subr.mxu0 0.0
    %1010 = vmatpush1.msra.mxu0 0.0
    %1011 = vmatprep.subr.mxu0 0.0
    %1012 = vmatpush1.msra.mxu0 0.0
    %1013 = vmatprep.subr.mxu0 0.0
    %1014 = vmatpush1.msra.mxu0 0.0
    %1015 = vmatprep.subr.mxu0 0.0
    %1016 = vmatpush1.msra.mxu0 0.0
    %1017 = vmatprep.mubr.f32.mxu0 0.0
    %1018 = vmatmul.mubr.f32.gmra.mrb[0].mxu0 %v951
    %v1019 = vpop.f32.mrb[0].mxu0
    %v1020 = vadd.f32 %v948, %v1019
    %v1021 = vpop.f32.mrb[0].mxu0
    %v1022 = vadd.f32 %v948, %v1021
    %1023 = vdwg.mxu0
    %1024 = vmatprep.subr.mxu0 %v933
    %1025 = vmatpush1.msra.mxu0 %v932
    %1026 = vmatprep.subr.mxu0 %v937
    %1027 = vmatpush1.msra.mxu0 %v936
    %1028 = vmatprep.subr.mxu0 %v941
    %1029 = vmatpush1.msra.mxu0 %v940
    %1030 = vmatprep.subr.mxu0 %v945
    %1031 = vmatpush1.msra.mxu0 %v944
    %1032 = vmatprep.subr.mxu0 0.0
    %1033 = vmatpush1.msra.mxu0 0.0
    %1034 = vmatprep.subr.mxu0 0.0
    %1035 = vmatpush1.msra.mxu0 0.0
    %1036 = vmatprep.subr.mxu0 0.0
    %1037 = vmatpush1.msra.mxu0 0.0
    %1038 = vmatprep.subr.mxu0 0.0
    %1039 = vmatpush1.msra.mxu0 0.0
    %1040 = vmatprep.subr.mxu0 0.0
    %1041 = vmatpush1.msra.mxu0 0.0
    %1042 = vmatprep.subr.mxu0 0.0
    %1043 = vmatpush1.msra.mxu0 0.0
    %1044 = vmatprep.subr.mxu0 0.0
    %1045 = vmatpush1.msra.mxu0 0.0
    %1046 = vmatprep.subr.mxu0 0.0
    %1047 = vmatpush1.msra.mxu0 0.0
    %1048 = vmatprep.subr.mxu0 0.0
    %1049 = vmatpush1.msra.mxu0 0.0
    %1050 = vmatprep.subr.mxu0 0.0
    %1051 = vmatpush1.msra.mxu0 0.0
    %1052 = vmatprep.subr.mxu0 0.0
    %1053 = vmatpush1.msra.mxu0 0.0
    %1054 = vmatprep.subr.mxu0 0.0
    %1055 = vmatpush1.msra.mxu0 0.0
    %1056 = vmatprep.subr.mxu0 0.0
    %1057 = vmatpush1.msra.mxu0 0.0
    %1058 = vmatprep.subr.mxu0 0.0
    %1059 = vmatpush1.msra.mxu0 0.0
    %1060 = vmatprep.subr.mxu0 0.0
    %1061 = vmatpush1.msra.mxu0 0.0
    %1062 = vmatprep.subr.mxu0 0.0
    %1063 = vmatpush1.msra.mxu0 0.0
    %1064 = vmatprep.subr.mxu0 0.0
    %1065 = vmatpush1.msra.mxu0 0.0
    %1066 = vmatprep.subr.mxu0 0.0
    %1067 = vmatpush1.msra.mxu0 0.0
    %1068 = vmatprep.subr.mxu0 0.0
    %1069 = vmatpush1.msra.mxu0 0.0
    %1070 = vmatprep.subr.mxu0 0.0
    %1071 = vmatpush1.msra.mxu0 0.0
    %1072 = vmatprep.subr.mxu0 0.0
    %1073 = vmatpush1.msra.mxu0 0.0
    %1074 = vmatprep.subr.mxu0 0.0
    %1075 = vmatpush1.msra.mxu0 0.0
    %1076 = vmatprep.subr.mxu0 0.0
    %1077 = vmatpush1.msra.mxu0 0.0
    %1078 = vmatprep.subr.mxu0 0.0
    %1079 = vmatpush1.msra.mxu0 0.0
    %1080 = vmatprep.subr.mxu0 0.0
    %1081 = vmatpush1.msra.mxu0 0.0
    %1082 = vmatprep.subr.mxu0 0.0
    %1083 = vmatpush1.msra.mxu0 0.0
    %1084 = vmatprep.subr.mxu0 0.0
    %1085 = vmatpush1.msra.mxu0 0.0
    %1086 = vmatprep.subr.mxu0 0.0
    %1087 = vmatpush1.msra.mxu0 0.0
    %1088 = vmatprep.mubr.f32.mxu0 0.0
    %1089 = vmatmul.mubr.f32.gmra.mrb[0].mxu0 %v951
    %v1090 = vpop.f32.mrb[0].mxu0
    %v1091 = vadd.f32 %v948, %v1090
    %v1092 = vpop.f32.mrb[0].mxu0
    %v1093 = vadd.f32 %v948, %v1092
    %1094 = vdwg.mxu0
    %v1099 = vcombine.low %v1020, %v1022
    %v1100 = vcombine.low %v1091, %v1093
    %v1102 = vunpack.c.l.s4 1983009808
    %v1103 = vunpack.c.0.s8 %v1102
    %v1104 = vlaneseq
    %v1105 = vshrl.u32 %v1104, 7
    %v1106 = vsub.s32 %v1103, %v1105
    %v1107 = vrot.slane %v1099, %v1106
    %v1109 = vunpack.c.l.s4 1983009808
    %v1110 = vunpack.c.0.s8 %v1109
    %v1111 = vlaneseq
    %v1112 = vshrl.u32 %v1111, 7
    %v1113 = vsub.s32 %v1110, %v1112
    %v1114 = vrot.slane %v1100, %v1113
    %v1115 = vcombine.low %v1107, %v1114
    %1117 = vst [vmem:[#allocation2] sm:$0xff] %v1115
    %s1118 = scalar_lea.vmem %s0, 512
    %v1119 = vld [vmem:[%s1118] sm:$0xff]
    %v1120 = vld [vmem:[%s1118 + $0x8] sm:$0xff]
    %v1121 = vld [vmem:[%s1118 + $0x10] sm:$0xff]
    %v1122 = vld [vmem:[%s1118 + $0x18] sm:$0xff]
    %v1123 = vld [vmem:[%s1118 + $0x20] sm:$0xff]
    %v1124 = vld [vmem:[%s1118 + $0x28] sm:$0xff]
    %v1125 = vld [vmem:[%s1118 + $0x30] sm:$0xff]
    %v1126 = vld [vmem:[%s1118 + $0x38] sm:$0xff]
    %v1127 = vld [vmem:[%s1118 + $0x40] sm:$0xff]
    %v1128 = vld [vmem:[%s1118 + $0x48] sm:$0xff]
    %v1129 = vld [vmem:[%s1118 + $0x50] sm:$0xff]
    %v1130 = vld [vmem:[%s1118 + $0x58] sm:$0xff]
    %v1131 = vld [vmem:[%s1118 + $0x60] sm:$0xff]
    %v1132 = vld [vmem:[%s1118 + $0x68] sm:$0xff]
    %v1133 = vld [vmem:[%s1118 + $0x70] sm:$0xff]
    %v1134 = vld [vmem:[%s1118 + $0x78] sm:$0xff]
    %v1135 = vld [vmem:[%s1118 + $0x80] sm:$0xff]
    %v1136 = vld [vmem:[%s1118 + $0x88] sm:$0xff]
    %v1137 = vld [vmem:[%s1118 + $0x90] sm:$0xff]
    %v1138 = vld [vmem:[%s1118 + $0x98] sm:$0xff]
    %v1139 = vld [vmem:[%s1118 + $0xa0] sm:$0xff]
    %v1140 = vld [vmem:[%s1118 + $0xa8] sm:$0xff]
    %v1141 = vld [vmem:[%s1118 + $0xb0] sm:$0xff]
    %v1142 = vld [vmem:[%s1118 + $0xb8] sm:$0xff]
    %v1143 = vld [vmem:[%s1118 + $0xc0] sm:$0xff]
    %v1144 = vld [vmem:[%s1118 + $0xc8] sm:$0xff]
    %v1145 = vld [vmem:[%s1118 + $0xd0] sm:$0xff]
    %v1146 = vld [vmem:[%s1118 + $0xd8] sm:$0xff]
    %v1147 = vld [vmem:[%s1118 + $0xe0] sm:$0xff]
    %v1148 = vld [vmem:[%s1118 + $0xe8] sm:$0xff]
    %v1149 = vld [vmem:[%s1118 + $0xf0] sm:$0xff]
    %v1150 = vld [vmem:[%s1118 + $0xf8] sm:$0xff]
    %v1151 = vld [vmem:[%s1118 + $0x100] sm:$0xff]
    %v1152 = vld [vmem:[%s1118 + $0x108] sm:$0xff]
    %v1153 = vld [vmem:[%s1118 + $0x110] sm:$0xff]
    %v1154 = vld [vmem:[%s1118 + $0x118] sm:$0xff]
    %v1155 = vld [vmem:[%s1118 + $0x120] sm:$0xff]
    %v1156 = vld [vmem:[%s1118 + $0x128] sm:$0xff]
    %v1157 = vld [vmem:[%s1118 + $0x130] sm:$0xff]
    %v1158 = vld [vmem:[%s1118 + $0x138] sm:$0xff]
    %v1159 = vld [vmem:[%s1118 + $0x140] sm:$0xff]
    %v1160 = vld [vmem:[%s1118 + $0x148] sm:$0xff]
    %v1161 = vld [vmem:[%s1118 + $0x150] sm:$0xff]
    %v1162 = vld [vmem:[%s1118 + $0x158] sm:$0xff]
    %v1163 = vld [vmem:[%s1118 + $0x160] sm:$0xff]
    %v1164 = vld [vmem:[%s1118 + $0x168] sm:$0xff]
    %v1165 = vld [vmem:[%s1118 + $0x170] sm:$0xff]
    %v1166 = vld [vmem:[%s1118 + $0x178] sm:$0xff]
    %v1167 = vld [vmem:[%s1118 + $0x180] sm:$0xff]
    %v1168 = vld [vmem:[%s1118 + $0x188] sm:$0xff]
    %v1169 = vld [vmem:[%s1118 + $0x190] sm:$0xff]
    %v1170 = vld [vmem:[%s1118 + $0x198] sm:$0xff]
    %v1171 = vld [vmem:[%s1118 + $0x1a0] sm:$0xff]
    %v1172 = vld [vmem:[%s1118 + $0x1a8] sm:$0xff]
    %v1173 = vld [vmem:[%s1118 + $0x1b0] sm:$0xff]
    %v1174 = vld [vmem:[%s1118 + $0x1b8] sm:$0xff]
    %v1175 = vld [vmem:[%s1118 + $0x1c0] sm:$0xff]
    %v1176 = vld [vmem:[%s1118 + $0x1c8] sm:$0xff]
    %v1177 = vld [vmem:[%s1118 + $0x1d0] sm:$0xff]
    %v1178 = vld [vmem:[%s1118 + $0x1d8] sm:$0xff]
    %v1179 = vld [vmem:[%s1118 + $0x1e0] sm:$0xff]
    %v1180 = vld [vmem:[%s1118 + $0x1e8] sm:$0xff]
    %v1181 = vld [vmem:[%s1118 + $0x1f0] sm:$0xff]
    %v1182 = vld [vmem:[%s1118 + $0x1f8] sm:$0xff]
    %v1184 = vsel %vm110, %v1119, 0
    %v1187 = vsel %vm110, %v1120, 0
    %v1190 = vsel %vm110, %v1121, 0
    %v1193 = vsel %vm110, %v1122, 0
    %v1196 = vsel %vm110, %v1123, 0
    %v1199 = vsel %vm110, %v1124, 0
    %v1202 = vsel %vm110, %v1125, 0
    %v1205 = vsel %vm110, %v1126, 0
    %v1208 = vsel %vm110, %v1127, 0
    %v1211 = vsel %vm110, %v1128, 0
    %v1214 = vsel %vm110, %v1129, 0
    %v1217 = vsel %vm110, %v1130, 0
    %v1220 = vsel %vm110, %v1131, 0
    %v1223 = vsel %vm110, %v1132, 0
    %v1226 = vsel %vm110, %v1133, 0
    %v1229 = vsel %vm110, %v1134, 0
    %v1232 = vsel %vm110, %v1135, 0
    %v1235 = vsel %vm110, %v1136, 0
    %v1238 = vsel %vm110, %v1137, 0
    %v1241 = vsel %vm110, %v1138, 0
    %v1244 = vsel %vm110, %v1139, 0
    %v1247 = vsel %vm110, %v1140, 0
    %v1250 = vsel %vm110, %v1141, 0
    %v1253 = vsel %vm110, %v1142, 0
    %v1256 = vsel %vm110, %v1143, 0
    %v1259 = vsel %vm110, %v1144, 0
    %v1262 = vsel %vm110, %v1145, 0
    %v1265 = vsel %vm110, %v1146, 0
    %v1268 = vsel %vm110, %v1147, 0
    %v1271 = vsel %vm110, %v1148, 0
    %v1274 = vsel %vm110, %v1149, 0
    %v1277 = vsel %vm110, %v1150, 0
    %v1280 = vsel %vm110, %v1151, 0
    %v1283 = vsel %vm110, %v1152, 0
    %v1286 = vsel %vm110, %v1153, 0
    %v1289 = vsel %vm110, %v1154, 0
    %v1292 = vsel %vm110, %v1155, 0
    %v1295 = vsel %vm110, %v1156, 0
    %v1298 = vsel %vm110, %v1157, 0
    %v1301 = vsel %vm110, %v1158, 0
    %v1304 = vsel %vm110, %v1159, 0
    %v1307 = vsel %vm110, %v1160, 0
    %v1310 = vsel %vm110, %v1161, 0
    %v1313 = vsel %vm110, %v1162, 0
    %v1316 = vsel %vm110, %v1163, 0
    %v1319 = vsel %vm110, %v1164, 0
    %v1322 = vsel %vm110, %v1165, 0
    %v1325 = vsel %vm110, %v1166, 0
    %v1328 = vsel %vm110, %v1167, 0
    %v1331 = vsel %vm110, %v1168, 0
    %v1334 = vsel %vm110, %v1169, 0
    %v1337 = vsel %vm110, %v1170, 0
    %v1340 = vsel %vm110, %v1171, 0
    %v1343 = vsel %vm110, %v1172, 0
    %v1346 = vsel %vm110, %v1173, 0
    %v1349 = vsel %vm110, %v1174, 0
    %v1352 = vsel %vm110, %v1175, 0
    %v1355 = vsel %vm110, %v1176, 0
    %v1358 = vsel %vm110, %v1177, 0
    %v1361 = vsel %vm110, %v1178, 0
    %v1364 = vsel %vm110, %v1179, 0
    %v1367 = vsel %vm110, %v1180, 0
    %v1370 = vsel %vm110, %v1181, 0
    %v1373 = vsel %vm110, %v1182, 0
    %1375 = vmatprep.subr.mxu0 0.0
    %1376 = vmatpush1.xpose.msra.mxu0 %v1184
    %1377 = vmatprep.subr.mxu0 0.0
    %1378 = vmatpush1.xpose.msra.mxu0 %v1187
    %1379 = vmatprep.subr.mxu0 0.0
    %1380 = vmatpush1.xpose.msra.mxu0 %v1190
    %1381 = vmatprep.subr.mxu0 0.0
    %1382 = vmatpush1.xpose.msra.mxu0 %v1193
    %1383 = vmatprep.subr.mxu0 0.0
    %1384 = vmatpush1.xpose.msra.mxu0 %v1196
    %1385 = vmatprep.subr.mxu0 0.0
    %1386 = vmatpush1.xpose.msra.mxu0 %v1199
    %1387 = vmatprep.subr.mxu0 0.0
    %1388 = vmatpush1.xpose.msra.mxu0 %v1202
    %1389 = vmatprep.subr.mxu0 0.0
    %1390 = vmatpush1.xpose.msra.mxu0 %v1205
    %1391 = vmatprep.subr.mxu0 0.0
    %1392 = vmatpush1.xpose.msra.mxu0 %v1208
    %1393 = vmatprep.subr.mxu0 0.0
    %1394 = vmatpush1.xpose.msra.mxu0 %v1211
    %1395 = vmatprep.subr.mxu0 0.0
    %1396 = vmatpush1.xpose.msra.mxu0 %v1214
    %1397 = vmatprep.subr.mxu0 0.0
    %1398 = vmatpush1.xpose.msra.mxu0 %v1217
    %1399 = vmatprep.subr.mxu0 0.0
    %1400 = vmatpush1.xpose.msra.mxu0 %v1220
    %1401 = vmatprep.subr.mxu0 0.0
    %1402 = vmatpush1.xpose.msra.mxu0 %v1223
    %1403 = vmatprep.subr.mxu0 0.0
    %1404 = vmatpush1.xpose.msra.mxu0 %v1226
    %1405 = vmatprep.subr.mxu0 0.0
    %1406 = vmatpush1.xpose.msra.mxu0 %v1229
    %1407 = vmatprep.subr.mxu0 0.0
    %1408 = vmatpush1.xpose.msra.mxu0 %v1232
    %1409 = vmatprep.subr.mxu0 0.0
    %1410 = vmatpush1.xpose.msra.mxu0 %v1235
    %1411 = vmatprep.subr.mxu0 0.0
    %1412 = vmatpush1.xpose.msra.mxu0 %v1238
    %1413 = vmatprep.subr.mxu0 0.0
    %1414 = vmatpush1.xpose.msra.mxu0 %v1241
    %1415 = vmatprep.subr.mxu0 0.0
    %1416 = vmatpush1.xpose.msra.mxu0 %v1244
    %1417 = vmatprep.subr.mxu0 0.0
    %1418 = vmatpush1.xpose.msra.mxu0 %v1247
    %1419 = vmatprep.subr.mxu0 0.0
    %1420 = vmatpush1.xpose.msra.mxu0 %v1250
    %1421 = vmatprep.subr.mxu0 0.0
    %1422 = vmatpush1.xpose.msra.mxu0 %v1253
    %1423 = vmatprep.subr.mxu0 0.0
    %1424 = vmatpush1.xpose.msra.mxu0 %v1256
    %1425 = vmatprep.subr.mxu0 0.0
    %1426 = vmatpush1.xpose.msra.mxu0 %v1259
    %1427 = vmatprep.subr.mxu0 0.0
    %1428 = vmatpush1.xpose.msra.mxu0 %v1262
    %1429 = vmatprep.subr.mxu0 0.0
    %1430 = vmatpush1.xpose.msra.mxu0 %v1265
    %1431 = vmatprep.subr.mxu0 0.0
    %1432 = vmatpush1.xpose.msra.mxu0 %v1268
    %1433 = vmatprep.subr.mxu0 0.0
    %1434 = vmatpush1.xpose.msra.mxu0 %v1271
    %1435 = vmatprep.subr.mxu0 0.0
    %1436 = vmatpush1.xpose.msra.mxu0 %v1274
    %1437 = vmatprep.subr.mxu0 0.0
    %1438 = vmatpush1.xpose.msra.mxu0 %v1277
    %1439 = vmatprep.mubr.f32.mxu0 0.0
    %1440 = vmatmul.mubr.f32.gmra.mrb[0].mxu0 %v112
    %v1441 = vpop.f32.mrb[0].mxu0
    %v1442 = vadd.f32 0.0, %v1441
    %v1443 = vpop.f32.mrb[0].mxu0
    %v1444 = vadd.f32 0.0, %v1443
    %1445 = vmatprep.mubr.f32.mxu0 0.0
    %1446 = vmatmul.mubr.f32.gmra.mrb[0].mxu0 %v115
    %v1447 = vpop.f32.mrb[0].mxu0
    %v1448 = vadd.f32 0.0, %v1447
    %v1449 = vpop.f32.mrb[0].mxu0
    %v1450 = vadd.f32 0.0, %v1449
    %1451 = vmatprep.mubr.f32.mxu0 0.0
    %1452 = vmatmul.mubr.f32.gmra.mrb[0].mxu0 %v118
    %v1453 = vpop.f32.mrb[0].mxu0
    %v1454 = vadd.f32 0.0, %v1453
    %v1455 = vpop.f32.mrb[0].mxu0
    %v1456 = vadd.f32 0.0, %v1455
    %1457 = vmatprep.mubr.f32.mxu0 0.0
    %1458 = vmatmul.mubr.f32.gmra.mrb[0].mxu0 %v121
    %v1459 = vpop.f32.mrb[0].mxu0
    %v1460 = vadd.f32 0.0, %v1459
    %v1461 = vpop.f32.mrb[0].mxu0
    %v1462 = vadd.f32 0.0, %v1461
    %1463 = vmatprep.mubr.f32.mxu0 0.0
    %1464 = vmatmul.mubr.f32.gmra.mrb[0].mxu0 %v124
    %v1465 = vpop.f32.mrb[0].mxu0
    %v1466 = vadd.f32 0.0, %v1465
    %v1467 = vpop.f32.mrb[0].mxu0
    %v1468 = vadd.f32 0.0, %v1467
    %1469 = vmatprep.mubr.f32.mxu0 0.0
    %1470 = vmatmul.mubr.f32.gmra.mrb[0].mxu0 %v127
    %v1471 = vpop.f32.mrb[0].mxu0
    %v1472 = vadd.f32 0.0, %v1471
    %v1473 = vpop.f32.mrb[0].mxu0
    %v1474 = vadd.f32 0.0, %v1473
    %1475 = vmatprep.mubr.f32.mxu0 0.0
    %1476 = vmatmul.mubr.f32.gmra.mrb[0].mxu0 %v130
    %v1477 = vpop.f32.mrb[0].mxu0
    %v1478 = vadd.f32 0.0, %v1477
    %v1479 = vpop.f32.mrb[0].mxu0
    %v1480 = vadd.f32 0.0, %v1479
    %1481 = vmatprep.mubr.f32.mxu0 0.0
    %1482 = vmatmul.mubr.f32.gmra.mrb[0].mxu0 %v133
    %v1483 = vpop.f32.mrb[0].mxu0
    %v1484 = vadd.f32 0.0, %v1483
    %v1485 = vpop.f32.mrb[0].mxu0
    %v1486 = vadd.f32 0.0, %v1485
    %1487 = vdwg.mxu0
    %1488 = vmatprep.subr.mxu0 0.0
    %1489 = vmatpush1.xpose.msra.mxu0 %v1280
    %1490 = vmatprep.subr.mxu0 0.0
    %1491 = vmatpush1.xpose.msra.mxu0 %v1283
    %1492 = vmatprep.subr.mxu0 0.0
    %1493 = vmatpush1.xpose.msra.mxu0 %v1286
    %1494 = vmatprep.subr.mxu0 0.0
    %1495 = vmatpush1.xpose.msra.mxu0 %v1289
    %1496 = vmatprep.subr.mxu0 0.0
    %1497 = vmatpush1.xpose.msra.mxu0 %v1292
    %1498 = vmatprep.subr.mxu0 0.0
    %1499 = vmatpush1.xpose.msra.mxu0 %v1295
    %1500 = vmatprep.subr.mxu0 0.0
    %1501 = vmatpush1.xpose.msra.mxu0 %v1298
    %1502 = vmatprep.subr.mxu0 0.0
    %1503 = vmatpush1.xpose.msra.mxu0 %v1301
    %1504 = vmatprep.subr.mxu0 0.0
    %1505 = vmatpush1.xpose.msra.mxu0 %v1304
    %1506 = vmatprep.subr.mxu0 0.0
    %1507 = vmatpush1.xpose.msra.mxu0 %v1307
    %1508 = vmatprep.subr.mxu0 0.0
    %1509 = vmatpush1.xpose.msra.mxu0 %v1310
    %1510 = vmatprep.subr.mxu0 0.0
    %1511 = vmatpush1.xpose.msra.mxu0 %v1313
    %1512 = vmatprep.subr.mxu0 0.0
    %1513 = vmatpush1.xpose.msra.mxu0 %v1316
    %1514 = vmatprep.subr.mxu0 0.0
    %1515 = vmatpush1.xpose.msra.mxu0 %v1319
    %1516 = vmatprep.subr.mxu0 0.0
    %1517 = vmatpush1.xpose.msra.mxu0 %v1322
    %1518 = vmatprep.subr.mxu0 0.0
    %1519 = vmatpush1.xpose.msra.mxu0 %v1325
    %1520 = vmatprep.subr.mxu0 0.0
    %1521 = vmatpush1.xpose.msra.mxu0 %v1328
    %1522 = vmatprep.subr.mxu0 0.0
    %1523 = vmatpush1.xpose.msra.mxu0 %v1331
    %1524 = vmatprep.subr.mxu0 0.0
    %1525 = vmatpush1.xpose.msra.mxu0 %v1334
    %1526 = vmatprep.subr.mxu0 0.0
    %1527 = vmatpush1.xpose.msra.mxu0 %v1337
    %1528 = vmatprep.subr.mxu0 0.0
    %1529 = vmatpush1.xpose.msra.mxu0 %v1340
    %1530 = vmatprep.subr.mxu0 0.0
    %1531 = vmatpush1.xpose.msra.mxu0 %v1343
    %1532 = vmatprep.subr.mxu0 0.0
    %1533 = vmatpush1.xpose.msra.mxu0 %v1346
    %1534 = vmatprep.subr.mxu0 0.0
    %1535 = vmatpush1.xpose.msra.mxu0 %v1349
    %1536 = vmatprep.subr.mxu0 0.0
    %1537 = vmatpush1.xpose.msra.mxu0 %v1352
    %1538 = vmatprep.subr.mxu0 0.0
    %1539 = vmatpush1.xpose.msra.mxu0 %v1355
    %1540 = vmatprep.subr.mxu0 0.0
    %1541 = vmatpush1.xpose.msra.mxu0 %v1358
    %1542 = vmatprep.subr.mxu0 0.0
    %1543 = vmatpush1.xpose.msra.mxu0 %v1361
    %1544 = vmatprep.subr.mxu0 0.0
    %1545 = vmatpush1.xpose.msra.mxu0 %v1364
    %1546 = vmatprep.subr.mxu0 0.0
    %1547 = vmatpush1.xpose.msra.mxu0 %v1367
    %1548 = vmatprep.subr.mxu0 0.0
    %1549 = vmatpush1.xpose.msra.mxu0 %v1370
    %1550 = vmatprep.subr.mxu0 0.0
    %1551 = vmatpush1.xpose.msra.mxu0 %v1373
    %1552 = vmatprep.mubr.f32.mxu0 0.0
    %1553 = vmatmul.mubr.f32.gmra.mrb[0].mxu0 %v112
    %v1554 = vpop.f32.mrb[0].mxu0
    %v1555 = vadd.f32 0.0, %v1554
    %v1556 = vpop.f32.mrb[0].mxu0
    %v1557 = vadd.f32 0.0, %v1556
    %1558 = vmatprep.mubr.f32.mxu0 0.0
    %1559 = vmatmul.mubr.f32.gmra.mrb[0].mxu0 %v115
    %v1560 = vpop.f32.mrb[0].mxu0
    %v1561 = vadd.f32 0.0, %v1560
    %v1562 = vpop.f32.mrb[0].mxu0
    %v1563 = vadd.f32 0.0, %v1562
    %1564 = vmatprep.mubr.f32.mxu0 0.0
    %1565 = vmatmul.mubr.f32.gmra.mrb[0].mxu0 %v118
    %v1566 = vpop.f32.mrb[0].mxu0
    %v1567 = vadd.f32 0.0, %v1566
    %v1568 = vpop.f32.mrb[0].mxu0
    %v1569 = vadd.f32 0.0, %v1568
    %1570 = vmatprep.mubr.f32.mxu0 0.0
    %1571 = vmatmul.mubr.f32.gmra.mrb[0].mxu0 %v121
    %v1572 = vpop.f32.mrb[0].mxu0
    %v1573 = vadd.f32 0.0, %v1572
    %v1574 = vpop.f32.mrb[0].mxu0
    %v1575 = vadd.f32 0.0, %v1574
    %1576 = vmatprep.mubr.f32.mxu0 0.0
    %1577 = vmatmul.mubr.f32.gmra.mrb[0].mxu0 %v124
    %v1578 = vpop.f32.mrb[0].mxu0
    %v1579 = vadd.f32 0.0, %v1578
    %v1580 = vpop.f32.mrb[0].mxu0
    %v1581 = vadd.f32 0.0, %v1580
    %1582 = vmatprep.mubr.f32.mxu0 0.0
    %1583 = vmatmul.mubr.f32.gmra.mrb[0].mxu0 %v127
    %v1584 = vpop.f32.mrb[0].mxu0
    %v1585 = vadd.f32 0.0, %v1584
    %v1586 = vpop.f32.mrb[0].mxu0
    %v1587 = vadd.f32 0.0, %v1586
    %1588 = vmatprep.mubr.f32.mxu0 0.0
    %1589 = vmatmul.mubr.f32.gmra.mrb[0].mxu0 %v130
    %v1590 = vpop.f32.mrb[0].mxu0
    %v1591 = vadd.f32 0.0, %v1590
    %v1592 = vpop.f32.mrb[0].mxu0
    %v1593 = vadd.f32 0.0, %v1592
    %1594 = vmatprep.mubr.f32.mxu0 0.0
    %1595 = vmatmul.mubr.f32.gmra.mrb[0].mxu0 %v133
    %v1596 = vpop.f32.mrb[0].mxu0
    %v1597 = vadd.f32 0.0, %v1596
    %v1598 = vpop.f32.mrb[0].mxu0
    %v1599 = vadd.f32 0.0, %v1598
    %1600 = vdwg.mxu0
    %v1601 = vadd.f32 %v1442, %v556
    %v1602 = vadd.f32 %v1444, %v556
    %v1603 = vadd.f32 %v1555, %v556
    %v1604 = vadd.f32 %v1557, %v556
    %v1605 = vadd.f32 %v1448, %v561
    %v1606 = vadd.f32 %v1450, %v561
    %v1607 = vadd.f32 %v1561, %v561
    %v1608 = vadd.f32 %v1563, %v561
    %v1609 = vadd.f32 %v1454, %v566
    %v1610 = vadd.f32 %v1456, %v566
    %v1611 = vadd.f32 %v1567, %v566
    %v1612 = vadd.f32 %v1569, %v566
    %v1613 = vadd.f32 %v1460, %v571
    %v1614 = vadd.f32 %v1462, %v571
    %v1615 = vadd.f32 %v1573, %v571
    %v1616 = vadd.f32 %v1575, %v571
    %v1617 = vmax.f32 %v1601, 0.0
    %v1618 = vmax.f32 %v1602, 0.0
    %v1619 = vmax.f32 %v1603, 0.0
    %v1620 = vmax.f32 %v1604, 0.0
    %v1621 = vmax.f32 %v1605, 0.0
    %v1622 = vmax.f32 %v1606, 0.0
    %v1623 = vmax.f32 %v1607, 0.0
    %v1624 = vmax.f32 %v1608, 0.0
    %v1625 = vmax.f32 %v1609, 0.0
    %v1626 = vmax.f32 %v1610, 0.0
    %v1627 = vmax.f32 %v1611, 0.0
    %v1628 = vmax.f32 %v1612, 0.0
    %v1629 = vmax.f32 %v1613, 0.0
    %v1630 = vmax.f32 %v1614, 0.0
    %v1631 = vmax.f32 %v1615, 0.0
    %v1632 = vmax.f32 %v1616, 0.0
    %v1633 = vpack.c.bf16 %v1621, %v1617
    %v1634 = vpack.c.bf16 %v1622, %v1618
    %v1635 = vpack.c.bf16 %v1623, %v1619
    %v1636 = vpack.c.bf16 %v1624, %v1620
    %v1637 = vpack.c.bf16 %v1629, %v1625
    %v1638 = vpack.c.bf16 %v1630, %v1626
    %v1639 = vpack.c.bf16 %v1631, %v1627
    %v1640 = vpack.c.bf16 %v1632, %v1628
    %1641 = vmatprep.subr.bf16.mxu0 %v1634
    %1642 = vmatpush1.bf16.msra.mxu0 %v1633
    %1643 = vmatprep.subr.bf16.mxu0 %v1638
    %1644 = vmatpush1.bf16.msra.mxu0 %v1637
    %1645 = vmatprep.subr.bf16.mxu0 0
    %1646 = vmatpush1.bf16.msra.mxu0 0
    %1647 = vmatprep.subr.bf16.mxu0 0
    %1648 = vmatpush1.bf16.msra.mxu0 0
    %1649 = vmatprep.subr.bf16.mxu0 0
    %1650 = vmatpush1.bf16.msra.mxu0 0
    %1651 = vmatprep.subr.bf16.mxu0 0
    %1652 = vmatpush1.bf16.msra.mxu0 0
    %1653 = vmatprep.subr.bf16.mxu0 0
    %1654 = vmatpush1.bf16.msra.mxu0 0
    %1655 = vmatprep.subr.bf16.mxu0 0
    %1656 = vmatpush1.bf16.msra.mxu0 0
    %1657 = vmatprep.subr.bf16.mxu0 0
    %1658 = vmatpush1.bf16.msra.mxu0 0
    %1659 = vmatprep.subr.bf16.mxu0 0
    %1660 = vmatpush1.bf16.msra.mxu0 0
    %1661 = vmatprep.subr.bf16.mxu0 0
    %1662 = vmatpush1.bf16.msra.mxu0 0
    %1663 = vmatprep.subr.bf16.mxu0 0
    %1664 = vmatpush1.bf16.msra.mxu0 0
    %1665 = vmatprep.subr.bf16.mxu0 0
    %1666 = vmatpush1.bf16.msra.mxu0 0
    %1667 = vmatprep.subr.bf16.mxu0 0
    %1668 = vmatpush1.bf16.msra.mxu0 0
    %1669 = vmatprep.subr.bf16.mxu0 0
    %1670 = vmatpush1.bf16.msra.mxu0 0
    %1671 = vmatprep.subr.bf16.mxu0 0
    %1672 = vmatpush1.bf16.msra.mxu0 0
    %1673 = vmatprep.mubr.bf16.mxu0 0
    %1674 = vmatmul.mubr.bf16.gmra.mrb[0].mxu0 %v641
    %v1675 = vpop.f32.mrb[0].mxu0
    %v1676 = vadd.f32 %v615, %v1675
    %v1677 = vpop.f32.mrb[0].mxu0
    %v1678 = vadd.f32 %v615, %v1677
    %v1679 = vpop.f32.mrb[0].mxu0
    %v1680 = vadd.f32 %v619, %v1679
    %v1681 = vpop.f32.mrb[0].mxu0
    %v1682 = vadd.f32 %v619, %v1681
    %1683 = vmatprep.mubr.bf16.mxu0 0
    %1684 = vmatmul.mubr.bf16.gmra.mrb[0].mxu0 %v644
    %v1685 = vpop.f32.mrb[0].mxu0
    %v1686 = vadd.f32 %v623, %v1685
    %v1687 = vpop.f32.mrb[0].mxu0
    %v1688 = vadd.f32 %v623, %v1687
    %v1689 = vpop.f32.mrb[0].mxu0
    %v1690 = vadd.f32 %v627, %v1689
    %v1691 = vpop.f32.mrb[0].mxu0
    %v1692 = vadd.f32 %v627, %v1691
    %1693 = vdwg.mxu0
    %1694 = vmatprep.subr.bf16.mxu0 %v1636
    %1695 = vmatpush1.bf16.msra.mxu0 %v1635
    %1696 = vmatprep.subr.bf16.mxu0 %v1640
    %1697 = vmatpush1.bf16.msra.mxu0 %v1639
    %1698 = vmatprep.subr.bf16.mxu0 0
    %1699 = vmatpush1.bf16.msra.mxu0 0
    %1700 = vmatprep.subr.bf16.mxu0 0
    %1701 = vmatpush1.bf16.msra.mxu0 0
    %1702 = vmatprep.subr.bf16.mxu0 0
    %1703 = vmatpush1.bf16.msra.mxu0 0
    %1704 = vmatprep.subr.bf16.mxu0 0
    %1705 = vmatpush1.bf16.msra.mxu0 0
    %1706 = vmatprep.subr.bf16.mxu0 0
    %1707 = vmatpush1.bf16.msra.mxu0 0
    %1708 = vmatprep.subr.bf16.mxu0 0
    %1709 = vmatpush1.bf16.msra.mxu0 0
    %1710 = vmatprep.subr.bf16.mxu0 0
    %1711 = vmatpush1.bf16.msra.mxu0 0
    %1712 = vmatprep.subr.bf16.mxu0 0
    %1713 = vmatpush1.bf16.msra.mxu0 0
    %1714 = vmatprep.subr.bf16.mxu0 0
    %1715 = vmatpush1.bf16.msra.mxu0 0
    %1716 = vmatprep.subr.bf16.mxu0 0
    %1717 = vmatpush1.bf16.msra.mxu0 0
    %1718 = vmatprep.subr.bf16.mxu0 0
    %1719 = vmatpush1.bf16.msra.mxu0 0
    %1720 = vmatprep.subr.bf16.mxu0 0
    %1721 = vmatpush1.bf16.msra.mxu0 0
    %1722 = vmatprep.subr.bf16.mxu0 0
    %1723 = vmatpush1.bf16.msra.mxu0 0
    %1724 = vmatprep.subr.bf16.mxu0 0
    %1725 = vmatpush1.bf16.msra.mxu0 0
    %1726 = vmatprep.mubr.bf16.mxu0 0
    %1727 = vmatmul.mubr.bf16.gmra.mrb[0].mxu0 %v641
    %v1728 = vpop.f32.mrb[0].mxu0
    %v1729 = vadd.f32 %v615, %v1728
    %v1730 = vpop.f32.mrb[0].mxu0
    %v1731 = vadd.f32 %v615, %v1730
    %v1732 = vpop.f32.mrb[0].mxu0
    %v1733 = vadd.f32 %v619, %v1732
    %v1734 = vpop.f32.mrb[0].mxu0
    %v1735 = vadd.f32 %v619, %v1734
    %1736 = vmatprep.mubr.bf16.mxu0 0
    %1737 = vmatmul.mubr.bf16.gmra.mrb[0].mxu0 %v644
    %v1738 = vpop.f32.mrb[0].mxu0
    %v1739 = vadd.f32 %v623, %v1738
    %v1740 = vpop.f32.mrb[0].mxu0
    %v1741 = vadd.f32 %v623, %v1740
    %v1742 = vpop.f32.mrb[0].mxu0
    %v1743 = vadd.f32 %v627, %v1742
    %v1744 = vpop.f32.mrb[0].mxu0
    %v1745 = vadd.f32 %v627, %v1744
    %1746 = vdwg.mxu0
    %v1747 = vmax.f32 %v1676, 0.0
    %v1748 = vmax.f32 %v1678, 0.0
    %v1749 = vmax.f32 %v1729, 0.0
    %v1750 = vmax.f32 %v1731, 0.0
    %v1751 = vmax.f32 %v1680, 0.0
    %v1752 = vmax.f32 %v1682, 0.0
    %v1753 = vmax.f32 %v1733, 0.0
    %v1754 = vmax.f32 %v1735, 0.0
    %v1755 = vmax.f32 %v1686, 0.0
    %v1756 = vmax.f32 %v1688, 0.0
    %v1757 = vmax.f32 %v1739, 0.0
    %v1758 = vmax.f32 %v1741, 0.0
    %v1759 = vmax.f32 %v1690, 0.0
    %v1760 = vmax.f32 %v1692, 0.0
    %v1761 = vmax.f32 %v1743, 0.0
    %v1762 = vmax.f32 %v1745, 0.0
    %v1763 = vpack.c.bf16 %v1751, %v1747
    %v1764 = vpack.c.bf16 %v1752, %v1748
    %v1765 = vpack.c.bf16 %v1753, %v1749
    %v1766 = vpack.c.bf16 %v1754, %v1750
    %v1767 = vpack.c.bf16 %v1759, %v1755
    %v1768 = vpack.c.bf16 %v1760, %v1756
    %v1769 = vpack.c.bf16 %v1761, %v1757
    %v1770 = vpack.c.bf16 %v1762, %v1758
    %1771 = vmatprep.subr.bf16.mxu0 %v1764
    %1772 = vmatpush1.bf16.msra.mxu0 %v1763
    %1773 = vmatprep.subr.bf16.mxu0 %v1768
    %1774 = vmatpush1.bf16.msra.mxu0 %v1767
    %1775 = vmatprep.subr.bf16.mxu0 0
    %1776 = vmatpush1.bf16.msra.mxu0 0
    %1777 = vmatprep.subr.bf16.mxu0 0
    %1778 = vmatpush1.bf16.msra.mxu0 0
    %1779 = vmatprep.subr.bf16.mxu0 0
    %1780 = vmatpush1.bf16.msra.mxu0 0
    %1781 = vmatprep.subr.bf16.mxu0 0
    %1782 = vmatpush1.bf16.msra.mxu0 0
    %1783 = vmatprep.subr.bf16.mxu0 0
    %1784 = vmatpush1.bf16.msra.mxu0 0
    %1785 = vmatprep.subr.bf16.mxu0 0
    %1786 = vmatpush1.bf16.msra.mxu0 0
    %1787 = vmatprep.subr.bf16.mxu0 0
    %1788 = vmatpush1.bf16.msra.mxu0 0
    %1789 = vmatprep.subr.bf16.mxu0 0
    %1790 = vmatpush1.bf16.msra.mxu0 0
    %1791 = vmatprep.subr.bf16.mxu0 0
    %1792 = vmatpush1.bf16.msra.mxu0 0
    %1793 = vmatprep.subr.bf16.mxu0 0
    %1794 = vmatpush1.bf16.msra.mxu0 0
    %1795 = vmatprep.subr.bf16.mxu0 0
    %1796 = vmatpush1.bf16.msra.mxu0 0
    %1797 = vmatprep.subr.bf16.mxu0 0
    %1798 = vmatpush1.bf16.msra.mxu0 0
    %1799 = vmatprep.subr.bf16.mxu0 0
    %1800 = vmatpush1.bf16.msra.mxu0 0
    %1801 = vmatprep.subr.bf16.mxu0 0
    %1802 = vmatpush1.bf16.msra.mxu0 0
    %1803 = vmatprep.mubr.bf16.mxu0 0
    %1804 = vmatmul.mubr.bf16.gmra.mrb[0].mxu0 %v787
    %v1805 = vpop.f32.mrb[0].mxu0
    %v1806 = vadd.f32 %v1466, %v1805
    %v1807 = vpop.f32.mrb[0].mxu0
    %v1808 = vadd.f32 %v1468, %v1807
    %v1809 = vpop.f32.mrb[0].mxu0
    %v1810 = vadd.f32 %v1472, %v1809
    %v1811 = vpop.f32.mrb[0].mxu0
    %v1812 = vadd.f32 %v1474, %v1811
    %1813 = vmatprep.mubr.bf16.mxu0 0
    %1814 = vmatmul.mubr.bf16.gmra.mrb[0].mxu0 %v790
    %v1815 = vpop.f32.mrb[0].mxu0
    %v1816 = vadd.f32 %v1478, %v1815
    %v1817 = vpop.f32.mrb[0].mxu0
    %v1818 = vadd.f32 %v1480, %v1817
    %v1819 = vpop.f32.mrb[0].mxu0
    %v1820 = vadd.f32 %v1484, %v1819
    %v1821 = vpop.f32.mrb[0].mxu0
    %v1822 = vadd.f32 %v1486, %v1821
    %1823 = vdwg.mxu0
    %1824 = vmatprep.subr.bf16.mxu0 %v1766
    %1825 = vmatpush1.bf16.msra.mxu0 %v1765
    %1826 = vmatprep.subr.bf16.mxu0 %v1770
    %1827 = vmatpush1.bf16.msra.mxu0 %v1769
    %1828 = vmatprep.subr.bf16.mxu0 0
    %1829 = vmatpush1.bf16.msra.mxu0 0
    %1830 = vmatprep.subr.bf16.mxu0 0
    %1831 = vmatpush1.bf16.msra.mxu0 0
    %1832 = vmatprep.subr.bf16.mxu0 0
    %1833 = vmatpush1.bf16.msra.mxu0 0
    %1834 = vmatprep.subr.bf16.mxu0 0
    %1835 = vmatpush1.bf16.msra.mxu0 0
    %1836 = vmatprep.subr.bf16.mxu0 0
    %1837 = vmatpush1.bf16.msra.mxu0 0
    %1838 = vmatprep.subr.bf16.mxu0 0
    %1839 = vmatpush1.bf16.msra.mxu0 0
    %1840 = vmatprep.subr.bf16.mxu0 0
    %1841 = vmatpush1.bf16.msra.mxu0 0
    %1842 = vmatprep.subr.bf16.mxu0 0
    %1843 = vmatpush1.bf16.msra.mxu0 0
    %1844 = vmatprep.subr.bf16.mxu0 0
    %1845 = vmatpush1.bf16.msra.mxu0 0
    %1846 = vmatprep.subr.bf16.mxu0 0
    %1847 = vmatpush1.bf16.msra.mxu0 0
    %1848 = vmatprep.subr.bf16.mxu0 0
    %1849 = vmatpush1.bf16.msra.mxu0 0
    %1850 = vmatprep.subr.bf16.mxu0 0
    %1851 = vmatpush1.bf16.msra.mxu0 0
    %1852 = vmatprep.subr.bf16.mxu0 0
    %1853 = vmatpush1.bf16.msra.mxu0 0
    %1854 = vmatprep.subr.bf16.mxu0 0
    %1855 = vmatpush1.bf16.msra.mxu0 0
    %1856 = vmatprep.mubr.bf16.mxu0 0
    %1857 = vmatmul.mubr.bf16.gmra.mrb[0].mxu0 %v787
    %v1858 = vpop.f32.mrb[0].mxu0
    %v1859 = vadd.f32 %v1579, %v1858
    %v1860 = vpop.f32.mrb[0].mxu0
    %v1861 = vadd.f32 %v1581, %v1860
    %v1862 = vpop.f32.mrb[0].mxu0
    %v1863 = vadd.f32 %v1585, %v1862
    %v1864 = vpop.f32.mrb[0].mxu0
    %v1865 = vadd.f32 %v1587, %v1864
    %1866 = vmatprep.mubr.bf16.mxu0 0
    %1867 = vmatmul.mubr.bf16.gmra.mrb[0].mxu0 %v790
    %v1868 = vpop.f32.mrb[0].mxu0
    %v1869 = vadd.f32 %v1591, %v1868
    %v1870 = vpop.f32.mrb[0].mxu0
    %v1871 = vadd.f32 %v1593, %v1870
    %v1872 = vpop.f32.mrb[0].mxu0
    %v1873 = vadd.f32 %v1597, %v1872
    %v1874 = vpop.f32.mrb[0].mxu0
    %v1875 = vadd.f32 %v1599, %v1874
    %1876 = vdwg.mxu0
    %v1877 = vadd.f32 %v1806, %v900
    %v1878 = vadd.f32 %v1808, %v900
    %v1879 = vadd.f32 %v1859, %v900
    %v1880 = vadd.f32 %v1861, %v900
    %v1881 = vadd.f32 %v1810, %v904
    %v1882 = vadd.f32 %v1812, %v904
    %v1883 = vadd.f32 %v1863, %v904
    %v1884 = vadd.f32 %v1865, %v904
    %v1885 = vadd.f32 %v1816, %v908
    %v1886 = vadd.f32 %v1818, %v908
    %v1887 = vadd.f32 %v1869, %v908
    %v1888 = vadd.f32 %v1871, %v908
    %v1889 = vadd.f32 %v1820, %v912
    %v1890 = vadd.f32 %v1822, %v912
    %v1891 = vadd.f32 %v1873, %v912
    %v1892 = vadd.f32 %v1875, %v912
    %v1893 = vmax.f32 %v1877, 0.0
    %v1894 = vmax.f32 %v1878, 0.0
    %v1895 = vmax.f32 %v1879, 0.0
    %v1896 = vmax.f32 %v1880, 0.0
    %v1897 = vmax.f32 %v1881, 0.0
    %v1898 = vmax.f32 %v1882, 0.0
    %v1899 = vmax.f32 %v1883, 0.0
    %v1900 = vmax.f32 %v1884, 0.0
    %v1901 = vmax.f32 %v1885, 0.0
    %v1902 = vmax.f32 %v1886, 0.0
    %v1903 = vmax.f32 %v1887, 0.0
    %v1904 = vmax.f32 %v1888, 0.0
    %v1905 = vmax.f32 %v1889, 0.0
    %v1906 = vmax.f32 %v1890, 0.0
    %v1907 = vmax.f32 %v1891, 0.0
    %v1908 = vmax.f32 %v1892, 0.0
    %1909 = vmatprep.subr.mxu0 %v1894
    %1910 = vmatpush1.msra.mxu0 %v1893
    %1911 = vmatprep.subr.mxu0 %v1898
    %1912 = vmatpush1.msra.mxu0 %v1897
    %1913 = vmatprep.subr.mxu0 %v1902
    %1914 = vmatpush1.msra.mxu0 %v1901
    %1915 = vmatprep.subr.mxu0 %v1906
    %1916 = vmatpush1.msra.mxu0 %v1905
    %1917 = vmatprep.subr.mxu0 0.0
    %1918 = vmatpush1.msra.mxu0 0.0
    %1919 = vmatprep.subr.mxu0 0.0
    %1920 = vmatpush1.msra.mxu0 0.0
    %1921 = vmatprep.subr.mxu0 0.0
    %1922 = vmatpush1.msra.mxu0 0.0
    %1923 = vmatprep.subr.mxu0 0.0
    %1924 = vmatpush1.msra.mxu0 0.0
    %1925 = vmatprep.subr.mxu0 0.0
    %1926 = vmatpush1.msra.mxu0 0.0
    %1927 = vmatprep.subr.mxu0 0.0
    %1928 = vmatpush1.msra.mxu0 0.0
    %1929 = vmatprep.subr.mxu0 0.0
    %1930 = vmatpush1.msra.mxu0 0.0
    %1931 = vmatprep.subr.mxu0 0.0
    %1932 = vmatpush1.msra.mxu0 0.0
    %1933 = vmatprep.subr.mxu0 0.0
    %1934 = vmatpush1.msra.mxu0 0.0
    %1935 = vmatprep.subr.mxu0 0.0
    %1936 = vmatpush1.msra.mxu0 0.0
    %1937 = vmatprep.subr.mxu0 0.0
    %1938 = vmatpush1.msra.mxu0 0.0
    %1939 = vmatprep.subr.mxu0 0.0
    %1940 = vmatpush1.msra.mxu0 0.0
    %1941 = vmatprep.subr.mxu0 0.0
    %1942 = vmatpush1.msra.mxu0 0.0
    %1943 = vmatprep.subr.mxu0 0.0
    %1944 = vmatpush1.msra.mxu0 0.0
    %1945 = vmatprep.subr.mxu0 0.0
    %1946 = vmatpush1.msra.mxu0 0.0
    %1947 = vmatprep.subr.mxu0 0.0
    %1948 = vmatpush1.msra.mxu0 0.0
    %1949 = vmatprep.subr.mxu0 0.0
    %1950 = vmatpush1.msra.mxu0 0.0
    %1951 = vmatprep.subr.mxu0 0.0
    %1952 = vmatpush1.msra.mxu0 0.0
    %1953 = vmatprep.subr.mxu0 0.0
    %1954 = vmatpush1.msra.mxu0 0.0
    %1955 = vmatprep.subr.mxu0 0.0
    %1956 = vmatpush1.msra.mxu0 0.0
    %1957 = vmatprep.subr.mxu0 0.0
    %1958 = vmatpush1.msra.mxu0 0.0
    %1959 = vmatprep.subr.mxu0 0.0
    %1960 = vmatpush1.msra.mxu0 0.0
    %1961 = vmatprep.subr.mxu0 0.0
    %1962 = vmatpush1.msra.mxu0 0.0
    %1963 = vmatprep.subr.mxu0 0.0
    %1964 = vmatpush1.msra.mxu0 0.0
    %1965 = vmatprep.subr.mxu0 0.0
    %1966 = vmatpush1.msra.mxu0 0.0
    %1967 = vmatprep.subr.mxu0 0.0
    %1968 = vmatpush1.msra.mxu0 0.0
    %1969 = vmatprep.subr.mxu0 0.0
    %1970 = vmatpush1.msra.mxu0 0.0
    %1971 = vmatprep.subr.mxu0 0.0
    %1972 = vmatpush1.msra.mxu0 0.0
    %1973 = vmatprep.mubr.f32.mxu0 0.0
    %1974 = vmatmul.mubr.f32.gmra.mrb[0].mxu0 %v951
    %v1975 = vpop.f32.mrb[0].mxu0
    %v1976 = vadd.f32 %v948, %v1975
    %v1977 = vpop.f32.mrb[0].mxu0
    %v1978 = vadd.f32 %v948, %v1977
    %1979 = vdwg.mxu0
    %1980 = vmatprep.subr.mxu0 %v1896
    %1981 = vmatpush1.msra.mxu0 %v1895
    %1982 = vmatprep.subr.mxu0 %v1900
    %1983 = vmatpush1.msra.mxu0 %v1899
    %1984 = vmatprep.subr.mxu0 %v1904
    %1985 = vmatpush1.msra.mxu0 %v1903
    %1986 = vmatprep.subr.mxu0 %v1908
    %1987 = vmatpush1.msra.mxu0 %v1907
    %1988 = vmatprep.subr.mxu0 0.0
    %1989 = vmatpush1.msra.mxu0 0.0
    %1990 = vmatprep.subr.mxu0 0.0
    %1991 = vmatpush1.msra.mxu0 0.0
    %1992 = vmatprep.subr.mxu0 0.0
    %1993 = vmatpush1.msra.mxu0 0.0
    %1994 = vmatprep.subr.mxu0 0.0
    %1995 = vmatpush1.msra.mxu0 0.0
    %1996 = vmatprep.subr.mxu0 0.0
    %1997 = vmatpush1.msra.mxu0 0.0
    %1998 = vmatprep.subr.mxu0 0.0
    %1999 = vmatpush1.msra.mxu0 0.0
    %2000 = vmatprep.subr.mxu0 0.0
    %2001 = vmatpush1.msra.mxu0 0.0
    %2002 = vmatprep.subr.mxu0 0.0
    %2003 = vmatpush1.msra.mxu0 0.0
    %2004 = vmatprep.subr.mxu0 0.0
    %2005 = vmatpush1.msra.mxu0 0.0
    %2006 = vmatprep.subr.mxu0 0.0
    %2007 = vmatpush1.msra.mxu0 0.0
    %2008 = vmatprep.subr.mxu0 0.0
    %2009 = vmatpush1.msra.mxu0 0.0
    %2010 = vmatprep.subr.mxu0 0.0
    %2011 = vmatpush1.msra.mxu0 0.0
    %2012 = vmatprep.subr.mxu0 0.0
    %2013 = vmatpush1.msra.mxu0 0.0
    %2014 = vmatprep.subr.mxu0 0.0
    %2015 = vmatpush1.msra.mxu0 0.0
    %2016 = vmatprep.subr.mxu0 0.0
    %2017 = vmatpush1.msra.mxu0 0.0
    %2018 = vmatprep.subr.mxu0 0.0
    %2019 = vmatpush1.msra.mxu0 0.0
    %2020 = vmatprep.subr.mxu0 0.0
    %2021 = vmatpush1.msra.mxu0 0.0
    %2022 = vmatprep.subr.mxu0 0.0
    %2023 = vmatpush1.msra.mxu0 0.0
    %2024 = vmatprep.subr.mxu0 0.0
    %2025 = vmatpush1.msra.mxu0 0.0
    %2026 = vmatprep.subr.mxu0 0.0
    %2027 = vmatpush1.msra.mxu0 0.0
    %2028 = vmatprep.subr.mxu0 0.0
    %2029 = vmatpush1.msra.mxu0 0.0
    %2030 = vmatprep.subr.mxu0 0.0
    %2031 = vmatpush1.msra.mxu0 0.0
    %2032 = vmatprep.subr.mxu0 0.0
    %2033 = vmatpush1.msra.mxu0 0.0
    %2034 = vmatprep.subr.mxu0 0.0
    %2035 = vmatpush1.msra.mxu0 0.0
    %2036 = vmatprep.subr.mxu0 0.0
    %2037 = vmatpush1.msra.mxu0 0.0
    %2038 = vmatprep.subr.mxu0 0.0
    %2039 = vmatpush1.msra.mxu0 0.0
    %2040 = vmatprep.subr.mxu0 0.0
    %2041 = vmatpush1.msra.mxu0 0.0
    %2042 = vmatprep.subr.mxu0 0.0
    %2043 = vmatpush1.msra.mxu0 0.0
    %2044 = vmatprep.mubr.f32.mxu0 0.0
    %2045 = vmatmul.mubr.f32.gmra.mrb[0].mxu0 %v951
    %v2046 = vpop.f32.mrb[0].mxu0
    %v2047 = vadd.f32 %v948, %v2046
    %v2048 = vpop.f32.mrb[0].mxu0
    %v2049 = vadd.f32 %v948, %v2048
    %2050 = vdwg.mxu0
    %v2055 = vcombine.low %v1976, %v1978
    %v2056 = vcombine.low %v2047, %v2049
    %v2058 = vunpack.c.l.s4 1983009808
    %v2059 = vunpack.c.0.s8 %v2058
    %v2060 = vlaneseq
    %v2061 = vshrl.u32 %v2060, 7
    %v2062 = vsub.s32 %v2059, %v2061
    %v2063 = vrot.slane %v2055, %v2062
    %v2065 = vunpack.c.l.s4 1983009808
    %v2066 = vunpack.c.0.s8 %v2065
    %v2067 = vlaneseq
    %v2068 = vshrl.u32 %v2067, 7
    %v2069 = vsub.s32 %v2066, %v2068
    %v2070 = vrot.slane %v2056, %v2069
    %v2071 = vcombine.low %v2063, %v2070
    %s2073 = scalar_lea.vmem [#allocation2], 8
    %2074 = vst [vmem:[%s2073] sm:$0xff] %v2071
    // Predicated region
    $region26: #{tpu_custom_call.1} parent=1 // pred_check
      _
    $region27: #{tpu_custom_call.1} parent=1 // pred_check_branch
      %2076 = sbr.rel (0) target = $region29
    $region28: #{tpu_custom_call.1} parent=1 // pred_region
      %s2078 = ssub.s32 256, 256
      %2079 = vsyncadd [#allocation3], %s2078
      %s2081 = sshll.u32 [#allocation2], 4
      %s2082 = int_to_ptr.vmem [resolvable:$true] %s2081
      %2084 = dma.vmem_to_hbm [thread:$0]  %s2082, 256, %s6, [#allocation3]
    $region29: #{tpu_custom_call.1} parent=1 // pred_fallthru
      _
    // Predicated region
    $region30: #{tpu_custom_call.1} parent=1 // pred_check
      _
    $region31: #{tpu_custom_call.1} parent=1 // pred_check_branch
      %2086 = sbr.rel (0) target = $region33
    $region32: #{tpu_custom_call.1} parent=1 // pred_region
      %2087 = dma.done [#allocation3], 256
    $region33: #{tpu_custom_call.1} parent=1 // pred_fallthru
      _
    %2088 = vsyncpa [#allocation3], 1

</llo_original>
